<compile_context>
chip_gen: v7x
topology: tpu7x:2x2x1
jax: 0.10.0
libtpu: 0.0.40
codegen_flags: <defaults>
</compile_context>

<pallas_src>
import functools

import jax
import jax.numpy as jnp
import numpy as np
from jax import lax
from jax.experimental import pallas as pl
from jax.experimental.pallas import tpu as pltpu

KSIZE = 7
PAD = KSIZE // 2


def cbam_kernel(x_ref, wa_ref, wb_ref, wsa_ref, o_ref, *, H, W, use_mxu):
    # x_ref  : (Bblk, C, HWp)                          VMEM  (HWp = H*W padded to x128)
    # wa_ref : (C, Cr) if use_mxu else (Cr, C)         VMEM  channel-MLP layer-1 weight
    # wb_ref : (Cr, C) if use_mxu else (C, Cr)         VMEM  channel-MLP layer-2 weight
    # wsa_ref: (2*7*7,)                                SMEM  flat spatial-conv weight (avg first)
    # o_ref  : (Bblk, C, HWp)                          VMEM  output
    Bblk, C, HWp = x_ref.shape
    HW = H * W
    inv_hw = 1.0 / HW
    inv_c = 1.0 / C

    # ---------------- Channel attention: global avg/max pool (f32 accumulation) ----------------
    sum_bc = jnp.sum(x_ref[...].astype(jnp.float32), axis=2)            # (Bblk, C)
    if HWp != HW:
        lane_ok = lax.broadcasted_iota(jnp.int32, (1, 1, HWp), 2) < HW
        fill = jnp.asarray(jnp.finfo(x_ref.dtype).min, dtype=x_ref.dtype)
        max_src = jnp.where(lane_ok, x_ref[...], fill)                  # keep pad out of the max
    else:
        max_src = x_ref[...]
    max_bc = jnp.max(max_src, axis=2).astype(jnp.float32)               # (Bblk, C)
    avg_bc = sum_bc * inv_hw                                            # (Bblk, C)

    # Fused channel MLP: one layer-1 matmul over [avg; max], shared layer-2.
    p = jnp.concatenate([avg_bc, max_bc], axis=0)                       # (2*Bblk, C) f32
    wa = wa_ref[...].astype(jnp.float32)
    wb = wb_ref[...].astype(jnp.float32)
    if use_mxu:
        h = jnp.maximum(jnp.dot(p, wa, preferred_element_type=jnp.float32), 0.0)   # (2B, Cr)
        hs = h[:Bblk] + h[Bblk:]                                        # (Bblk, Cr)
        logits = jnp.dot(hs, wb, preferred_element_type=jnp.float32)    # (Bblk, C)
    else:
        # Tiny C / Cr: keep it on the VPU (MXU tiles would be mostly padding).
        h = jnp.maximum(jnp.sum(p[:, None, :] * wa[None, :, :], axis=2), 0.0)      # (2B, Cr)
        hs = h[:Bblk] + h[Bblk:]                                        # (Bblk, Cr)
        logits = jnp.sum(hs[:, None, :] * wb[None, :, :], axis=2)       # (Bblk, C)
    ca = jax.nn.sigmoid(logits)                                         # (Bblk, C)
    ca3 = ca[:, :, None]                                                # (Bblk, C, 1)

    # ---------------- Spatial attention: pools with the channel scale folded in ----------------
    xs = x_ref[...].astype(jnp.float32) * ca3                           # consumed by reductions
    avg_sp = jnp.sum(xs, axis=1) * inv_c                                # (Bblk, HWp)
    max_sp = jnp.max(xs, axis=1)                                        # (Bblk, HWp)

    # Pack both maps: rows [0:Bblk) = avg, rows [Bblk:2Bblk) = max  -> one roll/mask per tap.
    m = jnp.concatenate([avg_sp, max_sp], axis=0)                       # (2*Bblk, HWp) f32

    # 7x7 "same" conv in the flat layout; column and row shifts separated, masks hoisted.
    idx = lax.broadcasted_iota(jnp.int32, (1, HWp), 1)
    col = idx % W
    row_is_avg = lax.broadcasted_iota(jnp.int32, (2 * Bblk, 1), 0) < Bblk

    cols = []
    for v in range(KSIZE):
        dv = v - PAD
        mv = m if dv == 0 else pltpu.roll(m, (-dv) % HWp, 1)
        cmask = (col >= (PAD - v)) & (col <= (W - 1 + PAD - v))
        cols.append(jnp.where(cmask, mv, 0.0))

    sa_acc = jnp.zeros((2 * Bblk, HWp), jnp.float32)
    for u in range(KSIZE):
        du = u - PAD
        inner = jnp.zeros((2 * Bblk, HWp), jnp.float32)
        for v in range(KSIZE):
            wvec = jnp.where(row_is_avg,
                             wsa_ref[u * KSIZE + v],
                             wsa_ref[KSIZE * KSIZE + u * KSIZE + v])    # (2*Bblk, 1)
            inner = inner + wvec * cols[v]
        if du != 0:
            inner = pltpu.roll(inner, (-du * W) % HWp, 1)
        rmask = (idx >= (PAD - u) * W) & (idx < (H + PAD - u) * W)
        sa_acc = sa_acc + jnp.where(rmask, inner, 0.0)

    sa = jax.nn.sigmoid(sa_acc[:Bblk] + sa_acc[Bblk:])                  # (Bblk, HWp)
    sa3 = sa[:, None, :]                                                # (Bblk, 1, HWp)

    # ---------------- Single fused scaling pass (no x1 temp) ----------------
    o_ref[...] = (x_ref[...].astype(jnp.float32) * ca3 * sa3).astype(o_ref.dtype)


def _round_up(x, m):
    return (x + m - 1) // m * m


def _pick_batch_block(B, per_elem_bytes, target_bytes=2 << 20):
    """Largest divisor of B whose block stays under ~2 MiB; keep >=2 grid steps if possible."""
    best = 1
    for d in range(1, B + 1):
        if B % d == 0 and d * per_elem_bytes <= target_bytes:
            best = d
    if B > 1 and best == B:            # leave >=2 grid steps so both TCs (v7x) get work
        for d in range(B - 1, 0, -1):
            if B % d == 0:
                best = d
                break
    return best


def _vmem_limit_bytes():
    """~75% of physical VMEM: ~96 MiB on v5e/v6e (128 MiB), ~48 MiB on v7x (64 MiB)."""
    cap = 64 * 1024 * 1024
    try:
        cap = int(getattr(pltpu.get_tpu_info(), "vmem_capacity_bytes", cap))
    except Exception:
        pass
    return max(32 * 1024 * 1024, min(100 * 1024 * 1024, (cap * 3) // 4))


def cbam_pallas(x, w1, w2, wsa):
    """x: (B,C,H,W); w1: (Cr,C); w2: (C,Cr); wsa: (2,7,7) (avg channel first)."""
    B, C, H, W = x.shape
    Cr = w1.shape[0]
    HW = H * W
    HWp = _round_up(HW, 128)                 # lane-dense blocks -> unmasked vst

    use_mxu = C >= 128 and Cr >= 8
    if use_mxu:
        wa, wb = jnp.transpose(w1), jnp.transpose(w2)   # (C,Cr), (Cr,C) for row-major dots
    else:
        wa, wb = w1, w2                                  # (Cr,C), (C,Cr) for the VPU path

    x_flat = x.reshape(B, C, HW)             # free reshape of contiguous NCHW
    if HWp != HW:
        x_flat = jnp.pad(x_flat, ((0, 0), (0, 0), (0, HWp - HW)))
    wsa_flat = wsa.reshape(-1).astype(jnp.float32)       # (98,) flat SMEM scalars

    Bblk = _pick_batch_block(B, C * HWp * x.dtype.itemsize)
    grid = (B // Bblk,)

    kernel = functools.partial(cbam_kernel, H=H, W=W, use_mxu=use_mxu)
    out = pl.pallas_call(
        kernel,
        out_shape=jax.ShapeDtypeStruct((B, C, HWp), x.dtype),
        grid=grid,
        in_specs=[
            pl.BlockSpec((Bblk, C, HWp), lambda b: (b, 0, 0)),
            pl.BlockSpec(wa.shape, lambda b: (0, 0)),
            pl.BlockSpec(wb.shape, lambda b: (0, 0)),
            pl.BlockSpec(memory_space=pltpu.MemorySpace.SMEM),
        ],
        out_specs=pl.BlockSpec((Bblk, C, HWp), lambda b: (b, 0, 0)),
        compiler_params=pltpu.CompilerParams(
            dimension_semantics=("parallel",),
            vmem_limit_bytes=_vmem_limit_bytes(),
        ),
    )(x_flat, wa, wb, wsa_flat)

    if HWp != HW:
        out = out[:, :, :HW]
    return out.reshape(B, C, H, W)


def cbam_ref(x, w1, w2, wsa):
    """Pure-JAX reference matching the PyTorch module semantics."""
    avg = jnp.mean(x, axis=(2, 3))               # (B, C)
    mx = jnp.max(x, axis=(2, 3))                 # (B, C)

    def fc(v):
        return jax.nn.relu(v @ w1.T) @ w2.T

    ca = jax.nn.sigmoid(fc(avg) + fc(mx))        # (B, C)
    x1 = x * ca[:, :, None, None]

    avg_m = jnp.mean(x1, axis=1, keepdims=True)
    max_m = jnp.max(x1, axis=1, keepdims=True)
    m = jnp.concatenate([avg_m, max_m], axis=1)  # (B, 2, H, W)
    sa = lax.conv_general_dilated(
        m, wsa[None], window_strides=(1, 1),
        padding=[(PAD, PAD), (PAD, PAD)],
        dimension_numbers=("NCHW", "OIHW", "NCHW"))
    return x1 * jax.nn.sigmoid(sa)


def _run_case(seed, B, C, H, W, ratio, wscale=0.5, rtol=2e-5, atol=2e-5):
    Cr = max(1, C // ratio)
    key = jax.random.fold_in(jax.random.PRNGKey(0), seed)
    k1, k2, k3, k4 = jax.random.split(key, 4)
    x = jax.random.normal(k1, (B, C, H, W), jnp.float32)
    # PyTorch weight shapes (Cr,C,1,1), (C,Cr,1,1), (1,2,7,7) -> squeezed here.
    w1 = jax.random.normal(k2, (Cr, C), jnp.float32) * wscale
    w2 = jax.random.normal(k3, (C, Cr), jnp.float32) * wscale
    wsa = jax.random.normal(k4, (2, KSIZE, KSIZE), jnp.float32) * 0.2

    out = jax.block_until_ready(cbam_pallas(x, w1, w2, wsa))
    ref = cbam_ref(x, w1, w2, wsa)
    np.testing.assert_allclose(np.asarray(out), np.asarray(ref), rtol=rtol, atol=atol)


if __name__ == "__main__":
    # Primary small case (lane-dense HW, VPU channel-MLP path, Bblk=1, grid=2).
    _run_case(0, B=2, C=4, H=16, W=16, ratio=2)
    # Padded-HW case (7x9 -> 128 lanes) with 2 batch elements per block.
    _run_case(1, B=4, C=8, H=7, W=9, ratio=4)
    # MXU channel-MLP path + padded HW (looser tolerance: MXU f32 dot rounding).
    _run_case(2, B=2, C=128, H=8, W=8, ratio=16, wscale=0.1, rtol=2e-2, atol=2e-2)
    print("KERNEL_OK")
</pallas_src>

<mosaic_0001>
module attributes {stable_mosaic.version = 11 : i64} {
  func.func @cbam_kernel(%arg0: i32, %arg1: memref<1x4x256xf32, #tpu.memory_space<vmem>>, %arg2: memref<2x4xf32, #tpu.memory_space<vmem>>, %arg3: memref<4x2xf32, #tpu.memory_space<vmem>>, %arg4: memref<98xf32, #tpu.memory_space<smem>>, %arg5: memref<1x4x256xf32, #tpu.memory_space<vmem>>) attributes {dimension_semantics = [#tpu.dimension_semantics<parallel>], iteration_bounds = array<i64: 2>, scalar_prefetch = 0 : i64, scratch_operands = 0 : i64, tpu.core_type = #tpu.core_type<tc>, window_params = [{transform_indices = @transform_0, window_bounds = array<i64: 1, 4, 256>}, {pipeline_mode = #tpu.pipeline_mode<synchronous>, transform_indices = @transform_1, window_bounds = array<i64: 2, 4>}, {pipeline_mode = #tpu.pipeline_mode<synchronous>, transform_indices = @transform_2, window_bounds = array<i64: 4, 2>}, {transform_indices = @transform_3, window_bounds = array<i64: 98>}, {transform_indices = @transform_4, window_bounds = array<i64: 1, 4, 256>}]} {
    %c0 = arith.constant 0 : index
    %c0_0 = arith.constant 0 : index
    %c0_1 = arith.constant 0 : index
    %0 = vector.load %arg1[%c0, %c0_0, %c0_1] : memref<1x4x256xf32, #tpu.memory_space<vmem>>, vector<1x4x256xf32>
    %cst = arith.constant dense<0.000000e+00> : vector<1x4xf32>
    %1 = vector.multi_reduction <add>, %0, %cst [2] : vector<1x4x256xf32> to vector<1x4xf32>
    %c0_2 = arith.constant 0 : index
    %c0_3 = arith.constant 0 : index
    %c0_4 = arith.constant 0 : index
    %2 = vector.load %arg1[%c0_2, %c0_3, %c0_4] : memref<1x4x256xf32, #tpu.memory_space<vmem>>, vector<1x4x256xf32>
    %cst_5 = arith.constant dense<0xFF800000> : vector<1x4xf32>
    %3 = vector.multi_reduction <maximumf>, %2, %cst_5 [2] : vector<1x4x256xf32> to vector<1x4xf32>
    %cst_6 = arith.constant 3.906250e-03 : f32
    %4 = vector.broadcast %cst_6 : f32 to vector<1x4xf32>
    %5 = arith.mulf %1, %4 : vector<1x4xf32>
    %6 = tpu.concatenate %5, %3 in 0 : vector<1x4xf32>, vector<1x4xf32> -> vector<2x4xf32>
    %c0_7 = arith.constant 0 : index
    %c0_8 = arith.constant 0 : index
    %7 = vector.load %arg2[%c0_7, %c0_8] : memref<2x4xf32, #tpu.memory_space<vmem>>, vector<2x4xf32>
    %c0_9 = arith.constant 0 : index
    %c0_10 = arith.constant 0 : index
    %8 = vector.load %arg3[%c0_9, %c0_10] : memref<4x2xf32, #tpu.memory_space<vmem>>, vector<4x2xf32>
    %9 = vector.shape_cast %6 : vector<2x4xf32> to vector<2x1x4xf32>
    %10 = vector.shape_cast %7 : vector<2x4xf32> to vector<1x2x4xf32>
    %11 = vector.broadcast %9 : vector<2x1x4xf32> to vector<2x2x4xf32>
    %12 = vector.broadcast %10 : vector<1x2x4xf32> to vector<2x2x4xf32>
    %13 = arith.mulf %11, %12 : vector<2x2x4xf32>
    %cst_11 = arith.constant dense<0.000000e+00> : vector<2x2xf32>
    %14 = vector.multi_reduction <add>, %13, %cst_11 [2] : vector<2x2x4xf32> to vector<2x2xf32>
    %cst_12 = arith.constant 0.000000e+00 : f32
    %15 = vector.broadcast %cst_12 : f32 to vector<2x2xf32>
    %16 = arith.maximumf %14, %15 : vector<2x2xf32>
    %17 = vector.extract_strided_slice %16 {offsets = [0, 0], sizes = [1, 2], strides = [1, 1]} : vector<2x2xf32> to vector<1x2xf32>
    %18 = vector.extract_strided_slice %16 {offsets = [1, 0], sizes = [1, 2], strides = [1, 1]} : vector<2x2xf32> to vector<1x2xf32>
    %19 = arith.addf %17, %18 : vector<1x2xf32>
    %20 = vector.shape_cast %19 : vector<1x2xf32> to vector<1x1x2xf32>
    %21 = vector.shape_cast %8 : vector<4x2xf32> to vector<1x4x2xf32>
    %22 = vector.broadcast %20 : vector<1x1x2xf32> to vector<1x4x2xf32>
    %23 = arith.mulf %22, %21 : vector<1x4x2xf32>
    %cst_13 = arith.constant dense<0.000000e+00> : vector<1x4xf32>
    %24 = vector.multi_reduction <add>, %23, %cst_13 [2] : vector<1x4x2xf32> to vector<1x4xf32>
    %25 = arith.negf %24 : vector<1x4xf32>
    %26 = math.exp %25 : vector<1x4xf32>
    %cst_14 = arith.constant 1.000000e+00 : f32
    %27 = vector.broadcast %cst_14 : f32 to vector<1x4xf32>
    %28 = arith.addf %27, %26 : vector<1x4xf32>
    %29 = arith.divf %27, %28 : vector<1x4xf32>
    %30 = vector.shape_cast %29 : vector<1x4xf32> to vector<1x4x1xf32>
    %c0_15 = arith.constant 0 : index
    %c0_16 = arith.constant 0 : index
    %c0_17 = arith.constant 0 : index
    %31 = vector.load %arg1[%c0_15, %c0_16, %c0_17] : memref<1x4x256xf32, #tpu.memory_space<vmem>>, vector<1x4x256xf32>
    %32 = vector.broadcast %30 : vector<1x4x1xf32> to vector<1x4x256xf32>
    %33 = arith.mulf %31, %32 : vector<1x4x256xf32>
    %cst_18 = arith.constant dense<0.000000e+00> : vector<1x256xf32>
    %34 = vector.multi_reduction <add>, %33, %cst_18 [1] : vector<1x4x256xf32> to vector<1x256xf32>
    %cst_19 = arith.constant 2.500000e-01 : f32
    %35 = vector.broadcast %cst_19 : f32 to vector<1x256xf32>
    %36 = arith.mulf %34, %35 : vector<1x256xf32>
    %cst_20 = arith.constant dense<0xFF800000> : vector<1x256xf32>
    %37 = vector.multi_reduction <maximumf>, %33, %cst_20 [1] : vector<1x4x256xf32> to vector<1x256xf32>
    %38 = tpu.concatenate %36, %37 in 0 : vector<1x256xf32>, vector<1x256xf32> -> vector<2x256xf32>
    %39 = tpu.iota {dimensions = array<i32: 1>} : vector<1x256xi32>
    %c16_i32 = arith.constant 16 : i32
    %c0_i32 = arith.constant 0 : i32
    %40 = arith.cmpi eq, %c16_i32, %c0_i32 : i32
    %c1_i32 = arith.constant 1 : i32
    %41 = arith.select %40, %c1_i32, %c16_i32 : i32
    %42 = vector.broadcast %41 : i32 to vector<1x256xi32>
    %43 = arith.remsi %39, %42 : vector<1x256xi32>
    %c0_i32_21 = arith.constant 0 : i32
    %44 = vector.broadcast %c0_i32_21 : i32 to vector<1x256xi32>
    %45 = arith.cmpi ne, %43, %44 : vector<1x256xi32>
    %c0_i32_22 = arith.constant 0 : i32
    %46 = vector.broadcast %c0_i32_22 : i32 to vector<1x256xi32>
    %47 = arith.cmpi slt, %43, %46 : vector<1x256xi32>
    %c0_i32_23 = arith.constant 0 : i32
    %48 = arith.cmpi slt, %41, %c0_i32_23 : i32
    %49 = vector.broadcast %48 : i1 to vector<1x256xi1>
    %50 = vector.broadcast %49 : vector<1x256xi1> to vector<1x256xi1>
    %51 = arith.xori %47, %50 : vector<1x256xi1>
    %52 = arith.andi %51, %45 : vector<1x256xi1>
    %53 = vector.broadcast %41 : i32 to vector<1x256xi32>
    %54 = arith.addi %43, %53 : vector<1x256xi32>
    %55 = arith.select %52, %54, %43 : vector<1x256xi1>, vector<1x256xi32>
    %56 = tpu.iota {dimensions = array<i32: 0>} : vector<2x1xi32>
    %c1_i32_24 = arith.constant 1 : i32
    %57 = vector.broadcast %c1_i32_24 : i32 to vector<2x1xi32>
    %58 = arith.cmpi slt, %56, %57 : vector<2x1xi32>
    %c3_i32 = arith.constant 3 : i32
    %59 = tpu.dynamic_rotate %38 by %c3_i32 dim 1 : vector<2x256xf32>, i32 -> vector<2x256xf32>
    %c3_i32_25 = arith.constant 3 : i32
    %60 = vector.broadcast %c3_i32_25 : i32 to vector<1x256xi32>
    %61 = arith.cmpi sge, %55, %60 : vector<1x256xi32>
    %c18_i32 = arith.constant 18 : i32
    %62 = vector.broadcast %c18_i32 : i32 to vector<1x256xi32>
    %63 = arith.cmpi sle, %55, %62 : vector<1x256xi32>
    %64 = arith.andi %61, %63 : vector<1x256xi1>
    %cst_26 = arith.constant 0.000000e+00 : f32
    %65 = vector.shape_cast %64 : vector<1x256xi1> to vector<1x256xi1>
    %66 = vector.broadcast %65 : vector<1x256xi1> to vector<2x256xi1>
    %67 = vector.broadcast %cst_26 : f32 to vector<2x256xf32>
    %68 = arith.select %66, %59, %67 : vector<2x256xi1>, vector<2x256xf32>
    %c2_i32 = arith.constant 2 : i32
    %69 = tpu.dynamic_rotate %38 by %c2_i32 dim 1 : vector<2x256xf32>, i32 -> vector<2x256xf32>
    %c2_i32_27 = arith.constant 2 : i32
    %70 = vector.broadcast %c2_i32_27 : i32 to vector<1x256xi32>
    %71 = arith.cmpi sge, %55, %70 : vector<1x256xi32>
    %c17_i32 = arith.constant 17 : i32
    %72 = vector.broadcast %c17_i32 : i32 to vector<1x256xi32>
    %73 = arith.cmpi sle, %55, %72 : vector<1x256xi32>
    %74 = arith.andi %71, %73 : vector<1x256xi1>
    %cst_28 = arith.constant 0.000000e+00 : f32
    %75 = vector.shape_cast %74 : vector<1x256xi1> to vector<1x256xi1>
    %76 = vector.broadcast %75 : vector<1x256xi1> to vector<2x256xi1>
    %77 = vector.broadcast %cst_28 : f32 to vector<2x256xf32>
    %78 = arith.select %76, %69, %77 : vector<2x256xi1>, vector<2x256xf32>
    %c1_i32_29 = arith.constant 1 : i32
    %79 = tpu.dynamic_rotate %38 by %c1_i32_29 dim 1 : vector<2x256xf32>, i32 -> vector<2x256xf32>
    %c1_i32_30 = arith.constant 1 : i32
    %80 = vector.broadcast %c1_i32_30 : i32 to vector<1x256xi32>
    %81 = arith.cmpi sge, %55, %80 : vector<1x256xi32>
    %c16_i32_31 = arith.constant 16 : i32
    %82 = vector.broadcast %c16_i32_31 : i32 to vector<1x256xi32>
    %83 = arith.cmpi sle, %55, %82 : vector<1x256xi32>
    %84 = arith.andi %81, %83 : vector<1x256xi1>
    %cst_32 = arith.constant 0.000000e+00 : f32
    %85 = vector.shape_cast %84 : vector<1x256xi1> to vector<1x256xi1>
    %86 = vector.broadcast %85 : vector<1x256xi1> to vector<2x256xi1>
    %87 = vector.broadcast %cst_32 : f32 to vector<2x256xf32>
    %88 = arith.select %86, %79, %87 : vector<2x256xi1>, vector<2x256xf32>
    %c0_i32_33 = arith.constant 0 : i32
    %89 = vector.broadcast %c0_i32_33 : i32 to vector<1x256xi32>
    %90 = arith.cmpi sge, %55, %89 : vector<1x256xi32>
    %c15_i32 = arith.constant 15 : i32
    %91 = vector.broadcast %c15_i32 : i32 to vector<1x256xi32>
    %92 = arith.cmpi sle, %55, %91 : vector<1x256xi32>
    %93 = arith.andi %90, %92 : vector<1x256xi1>
    %cst_34 = arith.constant 0.000000e+00 : f32
    %94 = vector.shape_cast %93 : vector<1x256xi1> to vector<1x256xi1>
    %95 = vector.broadcast %94 : vector<1x256xi1> to vector<2x256xi1>
    %96 = vector.broadcast %cst_34 : f32 to vector<2x256xf32>
    %97 = arith.select %95, %38, %96 : vector<2x256xi1>, vector<2x256xf32>
    %c255_i32 = arith.constant 255 : i32
    %98 = tpu.dynamic_rotate %38 by %c255_i32 dim 1 : vector<2x256xf32>, i32 -> vector<2x256xf32>
    %c-1_i32 = arith.constant -1 : i32
    %99 = vector.broadcast %c-1_i32 : i32 to vector<1x256xi32>
    %100 = arith.cmpi sge, %55, %99 : vector<1x256xi32>
    %c14_i32 = arith.constant 14 : i32
    %101 = vector.broadcast %c14_i32 : i32 to vector<1x256xi32>
    %102 = arith.cmpi sle, %55, %101 : vector<1x256xi32>
    %103 = arith.andi %100, %102 : vector<1x256xi1>
    %cst_35 = arith.constant 0.000000e+00 : f32
    %104 = vector.shape_cast %103 : vector<1x256xi1> to vector<1x256xi1>
    %105 = vector.broadcast %104 : vector<1x256xi1> to vector<2x256xi1>
    %106 = vector.broadcast %cst_35 : f32 to vector<2x256xf32>
    %107 = arith.select %105, %98, %106 : vector<2x256xi1>, vector<2x256xf32>
    %c254_i32 = arith.constant 254 : i32
    %108 = tpu.dynamic_rotate %38 by %c254_i32 dim 1 : vector<2x256xf32>, i32 -> vector<2x256xf32>
    %c-2_i32 = arith.constant -2 : i32
    %109 = vector.broadcast %c-2_i32 : i32 to vector<1x256xi32>
    %110 = arith.cmpi sge, %55, %109 : vector<1x256xi32>
    %c13_i32 = arith.constant 13 : i32
    %111 = vector.broadcast %c13_i32 : i32 to vector<1x256xi32>
    %112 = arith.cmpi sle, %55, %111 : vector<1x256xi32>
    %113 = arith.andi %110, %112 : vector<1x256xi1>
    %cst_36 = arith.constant 0.000000e+00 : f32
    %114 = vector.shape_cast %113 : vector<1x256xi1> to vector<1x256xi1>
    %115 = vector.broadcast %114 : vector<1x256xi1> to vector<2x256xi1>
    %116 = vector.broadcast %cst_36 : f32 to vector<2x256xf32>
    %117 = arith.select %115, %108, %116 : vector<2x256xi1>, vector<2x256xf32>
    %c253_i32 = arith.constant 253 : i32
    %118 = tpu.dynamic_rotate %38 by %c253_i32 dim 1 : vector<2x256xf32>, i32 -> vector<2x256xf32>
    %c-3_i32 = arith.constant -3 : i32
    %119 = vector.broadcast %c-3_i32 : i32 to vector<1x256xi32>
    %120 = arith.cmpi sge, %55, %119 : vector<1x256xi32>
    %c12_i32 = arith.constant 12 : i32
    %121 = vector.broadcast %c12_i32 : i32 to vector<1x256xi32>
    %122 = arith.cmpi sle, %55, %121 : vector<1x256xi32>
    %123 = arith.andi %120, %122 : vector<1x256xi1>
    %cst_37 = arith.constant 0.000000e+00 : f32
    %124 = vector.shape_cast %123 : vector<1x256xi1> to vector<1x256xi1>
    %125 = vector.broadcast %124 : vector<1x256xi1> to vector<2x256xi1>
    %126 = vector.broadcast %cst_37 : f32 to vector<2x256xf32>
    %127 = arith.select %125, %118, %126 : vector<2x256xi1>, vector<2x256xf32>
    %cst_38 = arith.constant 0.000000e+00 : f32
    %128 = vector.broadcast %cst_38 : f32 to vector<2x256xf32>
    %cst_39 = arith.constant 0.000000e+00 : f32
    %129 = vector.broadcast %cst_39 : f32 to vector<2x256xf32>
    %c0_40 = arith.constant 0 : index
    %130 = memref.load %arg4[%c0_40] : memref<98xf32, #tpu.memory_space<smem>>
    %c49 = arith.constant 49 : index
    %131 = memref.load %arg4[%c49] : memref<98xf32, #tpu.memory_space<smem>>
    %132 = vector.broadcast %130 : f32 to vector<2x1xf32>
    %133 = vector.broadcast %131 : f32 to vector<2x1xf32>
    %134 = arith.select %58, %132, %133 : vector<2x1xi1>, vector<2x1xf32>
    %135 = vector.broadcast %134 : vector<2x1xf32> to vector<2x256xf32>
    %136 = arith.mulf %135, %68 : vector<2x256xf32>
    %137 = arith.addf %129, %136 : vector<2x256xf32>
    %c1 = arith.constant 1 : index
    %138 = memref.load %arg4[%c1] : memref<98xf32, #tpu.memory_space<smem>>
    %c50 = arith.constant 50 : index
    %139 = memref.load %arg4[%c50] : memref<98xf32, #tpu.memory_space<smem>>
    %140 = vector.broadcast %138 : f32 to vector<2x1xf32>
    %141 = vector.broadcast %139 : f32 to vector<2x1xf32>
    %142 = arith.select %58, %140, %141 : vector<2x1xi1>, vector<2x1xf32>
    %143 = vector.broadcast %142 : vector<2x1xf32> to vector<2x256xf32>
    %144 = arith.mulf %143, %78 : vector<2x256xf32>
    %145 = arith.addf %137, %144 : vector<2x256xf32>
    %c2 = arith.constant 2 : index
    %146 = memref.load %arg4[%c2] : memref<98xf32, #tpu.memory_space<smem>>
    %c51 = arith.constant 51 : index
    %147 = memref.load %arg4[%c51] : memref<98xf32, #tpu.memory_space<smem>>
    %148 = vector.broadcast %146 : f32 to vector<2x1xf32>
    %149 = vector.broadcast %147 : f32 to vector<2x1xf32>
    %150 = arith.select %58, %148, %149 : vector<2x1xi1>, vector<2x1xf32>
    %151 = vector.broadcast %150 : vector<2x1xf32> to vector<2x256xf32>
    %152 = arith.mulf %151, %88 : vector<2x256xf32>
    %153 = arith.addf %145, %152 : vector<2x256xf32>
    %c3 = arith.constant 3 : index
    %154 = memref.load %arg4[%c3] : memref<98xf32, #tpu.memory_space<smem>>
    %c52 = arith.constant 52 : index
    %155 = memref.load %arg4[%c52] : memref<98xf32, #tpu.memory_space<smem>>
    %156 = vector.broadcast %154 : f32 to vector<2x1xf32>
    %157 = vector.broadcast %155 : f32 to vector<2x1xf32>
    %158 = arith.select %58, %156, %157 : vector<2x1xi1>, vector<2x1xf32>
    %159 = vector.broadcast %158 : vector<2x1xf32> to vector<2x256xf32>
    %160 = arith.mulf %159, %97 : vector<2x256xf32>
    %161 = arith.addf %153, %160 : vector<2x256xf32>
    %c4 = arith.constant 4 : index
    %162 = memref.load %arg4[%c4] : memref<98xf32, #tpu.memory_space<smem>>
    %c53 = arith.constant 53 : index
    %163 = memref.load %arg4[%c53] : memref<98xf32, #tpu.memory_space<smem>>
    %164 = vector.broadcast %162 : f32 to vector<2x1xf32>
    %165 = vector.broadcast %163 : f32 to vector<2x1xf32>
    %166 = arith.select %58, %164, %165 : vector<2x1xi1>, vector<2x1xf32>
    %167 = vector.broadcast %166 : vector<2x1xf32> to vector<2x256xf32>
    %168 = arith.mulf %167, %107 : vector<2x256xf32>
    %169 = arith.addf %161, %168 : vector<2x256xf32>
    %c5 = arith.constant 5 : index
    %170 = memref.load %arg4[%c5] : memref<98xf32, #tpu.memory_space<smem>>
    %c54 = arith.constant 54 : index
    %171 = memref.load %arg4[%c54] : memref<98xf32, #tpu.memory_space<smem>>
    %172 = vector.broadcast %170 : f32 to vector<2x1xf32>
    %173 = vector.broadcast %171 : f32 to vector<2x1xf32>
    %174 = arith.select %58, %172, %173 : vector<2x1xi1>, vector<2x1xf32>
    %175 = vector.broadcast %174 : vector<2x1xf32> to vector<2x256xf32>
    %176 = arith.mulf %175, %117 : vector<2x256xf32>
    %177 = arith.addf %169, %176 : vector<2x256xf32>
    %c6 = arith.constant 6 : index
    %178 = memref.load %arg4[%c6] : memref<98xf32, #tpu.memory_space<smem>>
    %c55 = arith.constant 55 : index
    %179 = memref.load %arg4[%c55] : memref<98xf32, #tpu.memory_space<smem>>
    %180 = vector.broadcast %178 : f32 to vector<2x1xf32>
    %181 = vector.broadcast %179 : f32 to vector<2x1xf32>
    %182 = arith.select %58, %180, %181 : vector<2x1xi1>, vector<2x1xf32>
    %183 = vector.broadcast %182 : vector<2x1xf32> to vector<2x256xf32>
    %184 = arith.mulf %183, %127 : vector<2x256xf32>
    %185 = arith.addf %177, %184 : vector<2x256xf32>
    %c48_i32 = arith.constant 48 : i32
    %186 = tpu.dynamic_rotate %185 by %c48_i32 dim 1 : vector<2x256xf32>, i32 -> vector<2x256xf32>
    %c48_i32_41 = arith.constant 48 : i32
    %187 = vector.broadcast %c48_i32_41 : i32 to vector<1x256xi32>
    %188 = arith.cmpi sge, %39, %187 : vector<1x256xi32>
    %c304_i32 = arith.constant 304 : i32
    %189 = vector.broadcast %c304_i32 : i32 to vector<1x256xi32>
    %190 = arith.cmpi slt, %39, %189 : vector<1x256xi32>
    %191 = arith.andi %188, %190 : vector<1x256xi1>
    %cst_42 = arith.constant 0.000000e+00 : f32
    %192 = vector.shape_cast %191 : vector<1x256xi1> to vector<1x256xi1>
    %193 = vector.broadcast %192 : vector<1x256xi1> to vector<2x256xi1>
    %194 = vector.broadcast %cst_42 : f32 to vector<2x256xf32>
    %195 = arith.select %193, %186, %194 : vector<2x256xi1>, vector<2x256xf32>
    %196 = arith.addf %128, %195 : vector<2x256xf32>
    %cst_43 = arith.constant 0.000000e+00 : f32
    %197 = vector.broadcast %cst_43 : f32 to vector<2x256xf32>
    %c7 = arith.constant 7 : index
    %198 = memref.load %arg4[%c7] : memref<98xf32, #tpu.memory_space<smem>>
    %c56 = arith.constant 56 : index
    %199 = memref.load %arg4[%c56] : memref<98xf32, #tpu.memory_space<smem>>
    %200 = vector.broadcast %198 : f32 to vector<2x1xf32>
    %201 = vector.broadcast %199 : f32 to vector<2x1xf32>
    %202 = arith.select %58, %200, %201 : vector<2x1xi1>, vector<2x1xf32>
    %203 = vector.broadcast %202 : vector<2x1xf32> to vector<2x256xf32>
    %204 = arith.mulf %203, %68 : vector<2x256xf32>
    %205 = arith.addf %197, %204 : vector<2x256xf32>
    %c8 = arith.constant 8 : index
    %206 = memref.load %arg4[%c8] : memref<98xf32, #tpu.memory_space<smem>>
    %c57 = arith.constant 57 : index
    %207 = memref.load %arg4[%c57] : memref<98xf32, #tpu.memory_space<smem>>
    %208 = vector.broadcast %206 : f32 to vector<2x1xf32>
    %209 = vector.broadcast %207 : f32 to vector<2x1xf32>
    %210 = arith.select %58, %208, %209 : vector<2x1xi1>, vector<2x1xf32>
    %211 = vector.broadcast %210 : vector<2x1xf32> to vector<2x256xf32>
    %212 = arith.mulf %211, %78 : vector<2x256xf32>
    %213 = arith.addf %205, %212 : vector<2x256xf32>
    %c9 = arith.constant 9 : index
    %214 = memref.load %arg4[%c9] : memref<98xf32, #tpu.memory_space<smem>>
    %c58 = arith.constant 58 : index
    %215 = memref.load %arg4[%c58] : memref<98xf32, #tpu.memory_space<smem>>
    %216 = vector.broadcast %214 : f32 to vector<2x1xf32>
    %217 = vector.broadcast %215 : f32 to vector<2x1xf32>
    %218 = arith.select %58, %216, %217 : vector<2x1xi1>, vector<2x1xf32>
    %219 = vector.broadcast %218 : vector<2x1xf32> to vector<2x256xf32>
    %220 = arith.mulf %219, %88 : vector<2x256xf32>
    %221 = arith.addf %213, %220 : vector<2x256xf32>
    %c10 = arith.constant 10 : index
    %222 = memref.load %arg4[%c10] : memref<98xf32, #tpu.memory_space<smem>>
    %c59 = arith.constant 59 : index
    %223 = memref.load %arg4[%c59] : memref<98xf32, #tpu.memory_space<smem>>
    %224 = vector.broadcast %222 : f32 to vector<2x1xf32>
    %225 = vector.broadcast %223 : f32 to vector<2x1xf32>
    %226 = arith.select %58, %224, %225 : vector<2x1xi1>, vector<2x1xf32>
    %227 = vector.broadcast %226 : vector<2x1xf32> to vector<2x256xf32>
    %228 = arith.mulf %227, %97 : vector<2x256xf32>
    %229 = arith.addf %221, %228 : vector<2x256xf32>
    %c11 = arith.constant 11 : index
    %230 = memref.load %arg4[%c11] : memref<98xf32, #tpu.memory_space<smem>>
    %c60 = arith.constant 60 : index
    %231 = memref.load %arg4[%c60] : memref<98xf32, #tpu.memory_space<smem>>
    %232 = vector.broadcast %230 : f32 to vector<2x1xf32>
    %233 = vector.broadcast %231 : f32 to vector<2x1xf32>
    %234 = arith.select %58, %232, %233 : vector<2x1xi1>, vector<2x1xf32>
    %235 = vector.broadcast %234 : vector<2x1xf32> to vector<2x256xf32>
    %236 = arith.mulf %235, %107 : vector<2x256xf32>
    %237 = arith.addf %229, %236 : vector<2x256xf32>
    %c12 = arith.constant 12 : index
    %238 = memref.load %arg4[%c12] : memref<98xf32, #tpu.memory_space<smem>>
    %c61 = arith.constant 61 : index
    %239 = memref.load %arg4[%c61] : memref<98xf32, #tpu.memory_space<smem>>
    %240 = vector.broadcast %238 : f32 to vector<2x1xf32>
    %241 = vector.broadcast %239 : f32 to vector<2x1xf32>
    %242 = arith.select %58, %240, %241 : vector<2x1xi1>, vector<2x1xf32>
    %243 = vector.broadcast %242 : vector<2x1xf32> to vector<2x256xf32>
    %244 = arith.mulf %243, %117 : vector<2x256xf32>
    %245 = arith.addf %237, %244 : vector<2x256xf32>
    %c13 = arith.constant 13 : index
    %246 = memref.load %arg4[%c13] : memref<98xf32, #tpu.memory_space<smem>>
    %c62 = arith.constant 62 : index
    %247 = memref.load %arg4[%c62] : memref<98xf32, #tpu.memory_space<smem>>
    %248 = vector.broadcast %246 : f32 to vector<2x1xf32>
    %249 = vector.broadcast %247 : f32 to vector<2x1xf32>
    %250 = arith.select %58, %248, %249 : vector<2x1xi1>, vector<2x1xf32>
    %251 = vector.broadcast %250 : vector<2x1xf32> to vector<2x256xf32>
    %252 = arith.mulf %251, %127 : vector<2x256xf32>
    %253 = arith.addf %245, %252 : vector<2x256xf32>
    %c32_i32 = arith.constant 32 : i32
    %254 = tpu.dynamic_rotate %253 by %c32_i32 dim 1 : vector<2x256xf32>, i32 -> vector<2x256xf32>
    %c32_i32_44 = arith.constant 32 : i32
    %255 = vector.broadcast %c32_i32_44 : i32 to vector<1x256xi32>
    %256 = arith.cmpi sge, %39, %255 : vector<1x256xi32>
    %c288_i32 = arith.constant 288 : i32
    %257 = vector.broadcast %c288_i32 : i32 to vector<1x256xi32>
    %258 = arith.cmpi slt, %39, %257 : vector<1x256xi32>
    %259 = arith.andi %256, %258 : vector<1x256xi1>
    %cst_45 = arith.constant 0.000000e+00 : f32
    %260 = vector.shape_cast %259 : vector<1x256xi1> to vector<1x256xi1>
    %261 = vector.broadcast %260 : vector<1x256xi1> to vector<2x256xi1>
    %262 = vector.broadcast %cst_45 : f32 to vector<2x256xf32>
    %263 = arith.select %261, %254, %262 : vector<2x256xi1>, vector<2x256xf32>
    %264 = arith.addf %196, %263 : vector<2x256xf32>
    %cst_46 = arith.constant 0.000000e+00 : f32
    %265 = vector.broadcast %cst_46 : f32 to vector<2x256xf32>
    %c14 = arith.constant 14 : index
    %266 = memref.load %arg4[%c14] : memref<98xf32, #tpu.memory_space<smem>>
    %c63 = arith.constant 63 : index
    %267 = memref.load %arg4[%c63] : memref<98xf32, #tpu.memory_space<smem>>
    %268 = vector.broadcast %266 : f32 to vector<2x1xf32>
    %269 = vector.broadcast %267 : f32 to vector<2x1xf32>
    %270 = arith.select %58, %268, %269 : vector<2x1xi1>, vector<2x1xf32>
    %271 = vector.broadcast %270 : vector<2x1xf32> to vector<2x256xf32>
    %272 = arith.mulf %271, %68 : vector<2x256xf32>
    %273 = arith.addf %265, %272 : vector<2x256xf32>
    %c15 = arith.constant 15 : index
    %274 = memref.load %arg4[%c15] : memref<98xf32, #tpu.memory_space<smem>>
    %c64 = arith.constant 64 : index
    %275 = memref.load %arg4[%c64] : memref<98xf32, #tpu.memory_space<smem>>
    %276 = vector.broadcast %274 : f32 to vector<2x1xf32>
    %277 = vector.broadcast %275 : f32 to vector<2x1xf32>
    %278 = arith.select %58, %276, %277 : vector<2x1xi1>, vector<2x1xf32>
    %279 = vector.broadcast %278 : vector<2x1xf32> to vector<2x256xf32>
    %280 = arith.mulf %279, %78 : vector<2x256xf32>
    %281 = arith.addf %273, %280 : vector<2x256xf32>
    %c16 = arith.constant 16 : index
    %282 = memref.load %arg4[%c16] : memref<98xf32, #tpu.memory_space<smem>>
    %c65 = arith.constant 65 : index
    %283 = memref.load %arg4[%c65] : memref<98xf32, #tpu.memory_space<smem>>
    %284 = vector.broadcast %282 : f32 to vector<2x1xf32>
    %285 = vector.broadcast %283 : f32 to vector<2x1xf32>
    %286 = arith.select %58, %284, %285 : vector<2x1xi1>, vector<2x1xf32>
    %287 = vector.broadcast %286 : vector<2x1xf32> to vector<2x256xf32>
    %288 = arith.mulf %287, %88 : vector<2x256xf32>
    %289 = arith.addf %281, %288 : vector<2x256xf32>
    %c17 = arith.constant 17 : index
    %290 = memref.load %arg4[%c17] : memref<98xf32, #tpu.memory_space<smem>>
    %c66 = arith.constant 66 : index
    %291 = memref.load %arg4[%c66] : memref<98xf32, #tpu.memory_space<smem>>
    %292 = vector.broadcast %290 : f32 to vector<2x1xf32>
    %293 = vector.broadcast %291 : f32 to vector<2x1xf32>
    %294 = arith.select %58, %292, %293 : vector<2x1xi1>, vector<2x1xf32>
    %295 = vector.broadcast %294 : vector<2x1xf32> to vector<2x256xf32>
    %296 = arith.mulf %295, %97 : vector<2x256xf32>
    %297 = arith.addf %289, %296 : vector<2x256xf32>
    %c18 = arith.constant 18 : index
    %298 = memref.load %arg4[%c18] : memref<98xf32, #tpu.memory_space<smem>>
    %c67 = arith.constant 67 : index
    %299 = memref.load %arg4[%c67] : memref<98xf32, #tpu.memory_space<smem>>
    %300 = vector.broadcast %298 : f32 to vector<2x1xf32>
    %301 = vector.broadcast %299 : f32 to vector<2x1xf32>
    %302 = arith.select %58, %300, %301 : vector<2x1xi1>, vector<2x1xf32>
    %303 = vector.broadcast %302 : vector<2x1xf32> to vector<2x256xf32>
    %304 = arith.mulf %303, %107 : vector<2x256xf32>
    %305 = arith.addf %297, %304 : vector<2x256xf32>
    %c19 = arith.constant 19 : index
    %306 = memref.load %arg4[%c19] : memref<98xf32, #tpu.memory_space<smem>>
    %c68 = arith.constant 68 : index
    %307 = memref.load %arg4[%c68] : memref<98xf32, #tpu.memory_space<smem>>
    %308 = vector.broadcast %306 : f32 to vector<2x1xf32>
    %309 = vector.broadcast %307 : f32 to vector<2x1xf32>
    %310 = arith.select %58, %308, %309 : vector<2x1xi1>, vector<2x1xf32>
    %311 = vector.broadcast %310 : vector<2x1xf32> to vector<2x256xf32>
    %312 = arith.mulf %311, %117 : vector<2x256xf32>
    %313 = arith.addf %305, %312 : vector<2x256xf32>
    %c20 = arith.constant 20 : index
    %314 = memref.load %arg4[%c20] : memref<98xf32, #tpu.memory_space<smem>>
    %c69 = arith.constant 69 : index
    %315 = memref.load %arg4[%c69] : memref<98xf32, #tpu.memory_space<smem>>
    %316 = vector.broadcast %314 : f32 to vector<2x1xf32>
    %317 = vector.broadcast %315 : f32 to vector<2x1xf32>
    %318 = arith.select %58, %316, %317 : vector<2x1xi1>, vector<2x1xf32>
    %319 = vector.broadcast %318 : vector<2x1xf32> to vector<2x256xf32>
    %320 = arith.mulf %319, %127 : vector<2x256xf32>
    %321 = arith.addf %313, %320 : vector<2x256xf32>
    %c16_i32_47 = arith.constant 16 : i32
    %322 = tpu.dynamic_rotate %321 by %c16_i32_47 dim 1 : vector<2x256xf32>, i32 -> vector<2x256xf32>
    %c16_i32_48 = arith.constant 16 : i32
    %323 = vector.broadcast %c16_i32_48 : i32 to vector<1x256xi32>
    %324 = arith.cmpi sge, %39, %323 : vector<1x256xi32>
    %c272_i32 = arith.constant 272 : i32
    %325 = vector.broadcast %c272_i32 : i32 to vector<1x256xi32>
    %326 = arith.cmpi slt, %39, %325 : vector<1x256xi32>
    %327 = arith.andi %324, %326 : vector<1x256xi1>
    %cst_49 = arith.constant 0.000000e+00 : f32
    %328 = vector.shape_cast %327 : vector<1x256xi1> to vector<1x256xi1>
    %329 = vector.broadcast %328 : vector<1x256xi1> to vector<2x256xi1>
    %330 = vector.broadcast %cst_49 : f32 to vector<2x256xf32>
    %331 = arith.select %329, %322, %330 : vector<2x256xi1>, vector<2x256xf32>
    %332 = arith.addf %264, %331 : vector<2x256xf32>
    %cst_50 = arith.constant 0.000000e+00 : f32
    %333 = vector.broadcast %cst_50 : f32 to vector<2x256xf32>
    %c21 = arith.constant 21 : index
    %334 = memref.load %arg4[%c21] : memref<98xf32, #tpu.memory_space<smem>>
    %c70 = arith.constant 70 : index
    %335 = memref.load %arg4[%c70] : memref<98xf32, #tpu.memory_space<smem>>
    %336 = vector.broadcast %334 : f32 to vector<2x1xf32>
    %337 = vector.broadcast %335 : f32 to vector<2x1xf32>
    %338 = arith.select %58, %336, %337 : vector<2x1xi1>, vector<2x1xf32>
    %339 = vector.broadcast %338 : vector<2x1xf32> to vector<2x256xf32>
    %340 = arith.mulf %339, %68 : vector<2x256xf32>
    %341 = arith.addf %333, %340 : vector<2x256xf32>
    %c22 = arith.constant 22 : index
    %342 = memref.load %arg4[%c22] : memref<98xf32, #tpu.memory_space<smem>>
    %c71 = arith.constant 71 : index
    %343 = memref.load %arg4[%c71] : memref<98xf32, #tpu.memory_space<smem>>
    %344 = vector.broadcast %342 : f32 to vector<2x1xf32>
    %345 = vector.broadcast %343 : f32 to vector<2x1xf32>
    %346 = arith.select %58, %344, %345 : vector<2x1xi1>, vector<2x1xf32>
    %347 = vector.broadcast %346 : vector<2x1xf32> to vector<2x256xf32>
    %348 = arith.mulf %347, %78 : vector<2x256xf32>
    %349 = arith.addf %341, %348 : vector<2x256xf32>
    %c23 = arith.constant 23 : index
    %350 = memref.load %arg4[%c23] : memref<98xf32, #tpu.memory_space<smem>>
    %c72 = arith.constant 72 : index
    %351 = memref.load %arg4[%c72] : memref<98xf32, #tpu.memory_space<smem>>
    %352 = vector.broadcast %350 : f32 to vector<2x1xf32>
    %353 = vector.broadcast %351 : f32 to vector<2x1xf32>
    %354 = arith.select %58, %352, %353 : vector<2x1xi1>, vector<2x1xf32>
    %355 = vector.broadcast %354 : vector<2x1xf32> to vector<2x256xf32>
    %356 = arith.mulf %355, %88 : vector<2x256xf32>
    %357 = arith.addf %349, %356 : vector<2x256xf32>
    %c24 = arith.constant 24 : index
    %358 = memref.load %arg4[%c24] : memref<98xf32, #tpu.memory_space<smem>>
    %c73 = arith.constant 73 : index
    %359 = memref.load %arg4[%c73] : memref<98xf32, #tpu.memory_space<smem>>
    %360 = vector.broadcast %358 : f32 to vector<2x1xf32>
    %361 = vector.broadcast %359 : f32 to vector<2x1xf32>
    %362 = arith.select %58, %360, %361 : vector<2x1xi1>, vector<2x1xf32>
    %363 = vector.broadcast %362 : vector<2x1xf32> to vector<2x256xf32>
    %364 = arith.mulf %363, %97 : vector<2x256xf32>
    %365 = arith.addf %357, %364 : vector<2x256xf32>
    %c25 = arith.constant 25 : index
    %366 = memref.load %arg4[%c25] : memref<98xf32, #tpu.memory_space<smem>>
    %c74 = arith.constant 74 : index
    %367 = memref.load %arg4[%c74] : memref<98xf32, #tpu.memory_space<smem>>
    %368 = vector.broadcast %366 : f32 to vector<2x1xf32>
    %369 = vector.broadcast %367 : f32 to vector<2x1xf32>
    %370 = arith.select %58, %368, %369 : vector<2x1xi1>, vector<2x1xf32>
    %371 = vector.broadcast %370 : vector<2x1xf32> to vector<2x256xf32>
    %372 = arith.mulf %371, %107 : vector<2x256xf32>
    %373 = arith.addf %365, %372 : vector<2x256xf32>
    %c26 = arith.constant 26 : index
    %374 = memref.load %arg4[%c26] : memref<98xf32, #tpu.memory_space<smem>>
    %c75 = arith.constant 75 : index
    %375 = memref.load %arg4[%c75] : memref<98xf32, #tpu.memory_space<smem>>
    %376 = vector.broadcast %374 : f32 to vector<2x1xf32>
    %377 = vector.broadcast %375 : f32 to vector<2x1xf32>
    %378 = arith.select %58, %376, %377 : vector<2x1xi1>, vector<2x1xf32>
    %379 = vector.broadcast %378 : vector<2x1xf32> to vector<2x256xf32>
    %380 = arith.mulf %379, %117 : vector<2x256xf32>
    %381 = arith.addf %373, %380 : vector<2x256xf32>
    %c27 = arith.constant 27 : index
    %382 = memref.load %arg4[%c27] : memref<98xf32, #tpu.memory_space<smem>>
    %c76 = arith.constant 76 : index
    %383 = memref.load %arg4[%c76] : memref<98xf32, #tpu.memory_space<smem>>
    %384 = vector.broadcast %382 : f32 to vector<2x1xf32>
    %385 = vector.broadcast %383 : f32 to vector<2x1xf32>
    %386 = arith.select %58, %384, %385 : vector<2x1xi1>, vector<2x1xf32>
    %387 = vector.broadcast %386 : vector<2x1xf32> to vector<2x256xf32>
    %388 = arith.mulf %387, %127 : vector<2x256xf32>
    %389 = arith.addf %381, %388 : vector<2x256xf32>
    %c0_i32_51 = arith.constant 0 : i32
    %390 = vector.broadcast %c0_i32_51 : i32 to vector<1x256xi32>
    %391 = arith.cmpi sge, %39, %390 : vector<1x256xi32>
    %c256_i32 = arith.constant 256 : i32
    %392 = vector.broadcast %c256_i32 : i32 to vector<1x256xi32>
    %393 = arith.cmpi slt, %39, %392 : vector<1x256xi32>
    %394 = arith.andi %391, %393 : vector<1x256xi1>
    %cst_52 = arith.constant 0.000000e+00 : f32
    %395 = vector.shape_cast %394 : vector<1x256xi1> to vector<1x256xi1>
    %396 = vector.broadcast %395 : vector<1x256xi1> to vector<2x256xi1>
    %397 = vector.broadcast %cst_52 : f32 to vector<2x256xf32>
    %398 = arith.select %396, %389, %397 : vector<2x256xi1>, vector<2x256xf32>
    %399 = arith.addf %332, %398 : vector<2x256xf32>
    %cst_53 = arith.constant 0.000000e+00 : f32
    %400 = vector.broadcast %cst_53 : f32 to vector<2x256xf32>
    %c28 = arith.constant 28 : index
    %401 = memref.load %arg4[%c28] : memref<98xf32, #tpu.memory_space<smem>>
    %c77 = arith.constant 77 : index
    %402 = memref.load %arg4[%c77] : memref<98xf32, #tpu.memory_space<smem>>
    %403 = vector.broadcast %401 : f32 to vector<2x1xf32>
    %404 = vector.broadcast %402 : f32 to vector<2x1xf32>
    %405 = arith.select %58, %403, %404 : vector<2x1xi1>, vector<2x1xf32>
    %406 = vector.broadcast %405 : vector<2x1xf32> to vector<2x256xf32>
    %407 = arith.mulf %406, %68 : vector<2x256xf32>
    %408 = arith.addf %400, %407 : vector<2x256xf32>
    %c29 = arith.constant 29 : index
    %409 = memref.load %arg4[%c29] : memref<98xf32, #tpu.memory_space<smem>>
    %c78 = arith.constant 78 : index
    %410 = memref.load %arg4[%c78] : memref<98xf32, #tpu.memory_space<smem>>
    %411 = vector.broadcast %409 : f32 to vector<2x1xf32>
    %412 = vector.broadcast %410 : f32 to vector<2x1xf32>
    %413 = arith.select %58, %411, %412 : vector<2x1xi1>, vector<2x1xf32>
    %414 = vector.broadcast %413 : vector<2x1xf32> to vector<2x256xf32>
    %415 = arith.mulf %414, %78 : vector<2x256xf32>
    %416 = arith.addf %408, %415 : vector<2x256xf32>
    %c30 = arith.constant 30 : index
    %417 = memref.load %arg4[%c30] : memref<98xf32, #tpu.memory_space<smem>>
    %c79 = arith.constant 79 : index
    %418 = memref.load %arg4[%c79] : memref<98xf32, #tpu.memory_space<smem>>
    %419 = vector.broadcast %417 : f32 to vector<2x1xf32>
    %420 = vector.broadcast %418 : f32 to vector<2x1xf32>
    %421 = arith.select %58, %419, %420 : vector<2x1xi1>, vector<2x1xf32>
    %422 = vector.broadcast %421 : vector<2x1xf32> to vector<2x256xf32>
    %423 = arith.mulf %422, %88 : vector<2x256xf32>
    %424 = arith.addf %416, %423 : vector<2x256xf32>
    %c31 = arith.constant 31 : index
    %425 = memref.load %arg4[%c31] : memref<98xf32, #tpu.memory_space<smem>>
    %c80 = arith.constant 80 : index
    %426 = memref.load %arg4[%c80] : memref<98xf32, #tpu.memory_space<smem>>
    %427 = vector.broadcast %425 : f32 to vector<2x1xf32>
    %428 = vector.broadcast %426 : f32 to vector<2x1xf32>
    %429 = arith.select %58, %427, %428 : vector<2x1xi1>, vector<2x1xf32>
    %430 = vector.broadcast %429 : vector<2x1xf32> to vector<2x256xf32>
    %431 = arith.mulf %430, %97 : vector<2x256xf32>
    %432 = arith.addf %424, %431 : vector<2x256xf32>
    %c32 = arith.constant 32 : index
    %433 = memref.load %arg4[%c32] : memref<98xf32, #tpu.memory_space<smem>>
    %c81 = arith.constant 81 : index
    %434 = memref.load %arg4[%c81] : memref<98xf32, #tpu.memory_space<smem>>
    %435 = vector.broadcast %433 : f32 to vector<2x1xf32>
    %436 = vector.broadcast %434 : f32 to vector<2x1xf32>
    %437 = arith.select %58, %435, %436 : vector<2x1xi1>, vector<2x1xf32>
    %438 = vector.broadcast %437 : vector<2x1xf32> to vector<2x256xf32>
    %439 = arith.mulf %438, %107 : vector<2x256xf32>
    %440 = arith.addf %432, %439 : vector<2x256xf32>
    %c33 = arith.constant 33 : index
    %441 = memref.load %arg4[%c33] : memref<98xf32, #tpu.memory_space<smem>>
    %c82 = arith.constant 82 : index
    %442 = memref.load %arg4[%c82] : memref<98xf32, #tpu.memory_space<smem>>
    %443 = vector.broadcast %441 : f32 to vector<2x1xf32>
    %444 = vector.broadcast %442 : f32 to vector<2x1xf32>
    %445 = arith.select %58, %443, %444 : vector<2x1xi1>, vector<2x1xf32>
    %446 = vector.broadcast %445 : vector<2x1xf32> to vector<2x256xf32>
    %447 = arith.mulf %446, %117 : vector<2x256xf32>
    %448 = arith.addf %440, %447 : vector<2x256xf32>
    %c34 = arith.constant 34 : index
    %449 = memref.load %arg4[%c34] : memref<98xf32, #tpu.memory_space<smem>>
    %c83 = arith.constant 83 : index
    %450 = memref.load %arg4[%c83] : memref<98xf32, #tpu.memory_space<smem>>
    %451 = vector.broadcast %449 : f32 to vector<2x1xf32>
    %452 = vector.broadcast %450 : f32 to vector<2x1xf32>
    %453 = arith.select %58, %451, %452 : vector<2x1xi1>, vector<2x1xf32>
    %454 = vector.broadcast %453 : vector<2x1xf32> to vector<2x256xf32>
    %455 = arith.mulf %454, %127 : vector<2x256xf32>
    %456 = arith.addf %448, %455 : vector<2x256xf32>
    %c240_i32 = arith.constant 240 : i32
    %457 = tpu.dynamic_rotate %456 by %c240_i32 dim 1 : vector<2x256xf32>, i32 -> vector<2x256xf32>
    %c-16_i32 = arith.constant -16 : i32
    %458 = vector.broadcast %c-16_i32 : i32 to vector<1x256xi32>
    %459 = arith.cmpi sge, %39, %458 : vector<1x256xi32>
    %c240_i32_54 = arith.constant 240 : i32
    %460 = vector.broadcast %c240_i32_54 : i32 to vector<1x256xi32>
    %461 = arith.cmpi slt, %39, %460 : vector<1x256xi32>
    %462 = arith.andi %459, %461 : vector<1x256xi1>
    %cst_55 = arith.constant 0.000000e+00 : f32
    %463 = vector.shape_cast %462 : vector<1x256xi1> to vector<1x256xi1>
    %464 = vector.broadcast %463 : vector<1x256xi1> to vector<2x256xi1>
    %465 = vector.broadcast %cst_55 : f32 to vector<2x256xf32>
    %466 = arith.select %464, %457, %465 : vector<2x256xi1>, vector<2x256xf32>
    %467 = arith.addf %399, %466 : vector<2x256xf32>
    %cst_56 = arith.constant 0.000000e+00 : f32
    %468 = vector.broadcast %cst_56 : f32 to vector<2x256xf32>
    %c35 = arith.constant 35 : index
    %469 = memref.load %arg4[%c35] : memref<98xf32, #tpu.memory_space<smem>>
    %c84 = arith.constant 84 : index
    %470 = memref.load %arg4[%c84] : memref<98xf32, #tpu.memory_space<smem>>
    %471 = vector.broadcast %469 : f32 to vector<2x1xf32>
    %472 = vector.broadcast %470 : f32 to vector<2x1xf32>
    %473 = arith.select %58, %471, %472 : vector<2x1xi1>, vector<2x1xf32>
    %474 = vector.broadcast %473 : vector<2x1xf32> to vector<2x256xf32>
    %475 = arith.mulf %474, %68 : vector<2x256xf32>
    %476 = arith.addf %468, %475 : vector<2x256xf32>
    %c36 = arith.constant 36 : index
    %477 = memref.load %arg4[%c36] : memref<98xf32, #tpu.memory_space<smem>>
    %c85 = arith.constant 85 : index
    %478 = memref.load %arg4[%c85] : memref<98xf32, #tpu.memory_space<smem>>
    %479 = vector.broadcast %477 : f32 to vector<2x1xf32>
    %480 = vector.broadcast %478 : f32 to vector<2x1xf32>
    %481 = arith.select %58, %479, %480 : vector<2x1xi1>, vector<2x1xf32>
    %482 = vector.broadcast %481 : vector<2x1xf32> to vector<2x256xf32>
    %483 = arith.mulf %482, %78 : vector<2x256xf32>
    %484 = arith.addf %476, %483 : vector<2x256xf32>
    %c37 = arith.constant 37 : index
    %485 = memref.load %arg4[%c37] : memref<98xf32, #tpu.memory_space<smem>>
    %c86 = arith.constant 86 : index
    %486 = memref.load %arg4[%c86] : memref<98xf32, #tpu.memory_space<smem>>
    %487 = vector.broadcast %485 : f32 to vector<2x1xf32>
    %488 = vector.broadcast %486 : f32 to vector<2x1xf32>
    %489 = arith.select %58, %487, %488 : vector<2x1xi1>, vector<2x1xf32>
    %490 = vector.broadcast %489 : vector<2x1xf32> to vector<2x256xf32>
    %491 = arith.mulf %490, %88 : vector<2x256xf32>
    %492 = arith.addf %484, %491 : vector<2x256xf32>
    %c38 = arith.constant 38 : index
    %493 = memref.load %arg4[%c38] : memref<98xf32, #tpu.memory_space<smem>>
    %c87 = arith.constant 87 : index
    %494 = memref.load %arg4[%c87] : memref<98xf32, #tpu.memory_space<smem>>
    %495 = vector.broadcast %493 : f32 to vector<2x1xf32>
    %496 = vector.broadcast %494 : f32 to vector<2x1xf32>
    %497 = arith.select %58, %495, %496 : vector<2x1xi1>, vector<2x1xf32>
    %498 = vector.broadcast %497 : vector<2x1xf32> to vector<2x256xf32>
    %499 = arith.mulf %498, %97 : vector<2x256xf32>
    %500 = arith.addf %492, %499 : vector<2x256xf32>
    %c39 = arith.constant 39 : index
    %501 = memref.load %arg4[%c39] : memref<98xf32, #tpu.memory_space<smem>>
    %c88 = arith.constant 88 : index
    %502 = memref.load %arg4[%c88] : memref<98xf32, #tpu.memory_space<smem>>
    %503 = vector.broadcast %501 : f32 to vector<2x1xf32>
    %504 = vector.broadcast %502 : f32 to vector<2x1xf32>
    %505 = arith.select %58, %503, %504 : vector<2x1xi1>, vector<2x1xf32>
    %506 = vector.broadcast %505 : vector<2x1xf32> to vector<2x256xf32>
    %507 = arith.mulf %506, %107 : vector<2x256xf32>
    %508 = arith.addf %500, %507 : vector<2x256xf32>
    %c40 = arith.constant 40 : index
    %509 = memref.load %arg4[%c40] : memref<98xf32, #tpu.memory_space<smem>>
    %c89 = arith.constant 89 : index
    %510 = memref.load %arg4[%c89] : memref<98xf32, #tpu.memory_space<smem>>
    %511 = vector.broadcast %509 : f32 to vector<2x1xf32>
    %512 = vector.broadcast %510 : f32 to vector<2x1xf32>
    %513 = arith.select %58, %511, %512 : vector<2x1xi1>, vector<2x1xf32>
    %514 = vector.broadcast %513 : vector<2x1xf32> to vector<2x256xf32>
    %515 = arith.mulf %514, %117 : vector<2x256xf32>
    %516 = arith.addf %508, %515 : vector<2x256xf32>
    %c41 = arith.constant 41 : index
    %517 = memref.load %arg4[%c41] : memref<98xf32, #tpu.memory_space<smem>>
    %c90 = arith.constant 90 : index
    %518 = memref.load %arg4[%c90] : memref<98xf32, #tpu.memory_space<smem>>
    %519 = vector.broadcast %517 : f32 to vector<2x1xf32>
    %520 = vector.broadcast %518 : f32 to vector<2x1xf32>
    %521 = arith.select %58, %519, %520 : vector<2x1xi1>, vector<2x1xf32>
    %522 = vector.broadcast %521 : vector<2x1xf32> to vector<2x256xf32>
    %523 = arith.mulf %522, %127 : vector<2x256xf32>
    %524 = arith.addf %516, %523 : vector<2x256xf32>
    %c224_i32 = arith.constant 224 : i32
    %525 = tpu.dynamic_rotate %524 by %c224_i32 dim 1 : vector<2x256xf32>, i32 -> vector<2x256xf32>
    %c-32_i32 = arith.constant -32 : i32
    %526 = vector.broadcast %c-32_i32 : i32 to vector<1x256xi32>
    %527 = arith.cmpi sge, %39, %526 : vector<1x256xi32>
    %c224_i32_57 = arith.constant 224 : i32
    %528 = vector.broadcast %c224_i32_57 : i32 to vector<1x256xi32>
    %529 = arith.cmpi slt, %39, %528 : vector<1x256xi32>
    %530 = arith.andi %527, %529 : vector<1x256xi1>
    %cst_58 = arith.constant 0.000000e+00 : f32
    %531 = vector.shape_cast %530 : vector<1x256xi1> to vector<1x256xi1>
    %532 = vector.broadcast %531 : vector<1x256xi1> to vector<2x256xi1>
    %533 = vector.broadcast %cst_58 : f32 to vector<2x256xf32>
    %534 = arith.select %532, %525, %533 : vector<2x256xi1>, vector<2x256xf32>
    %535 = arith.addf %467, %534 : vector<2x256xf32>
    %cst_59 = arith.constant 0.000000e+00 : f32
    %536 = vector.broadcast %cst_59 : f32 to vector<2x256xf32>
    %c42 = arith.constant 42 : index
    %537 = memref.load %arg4[%c42] : memref<98xf32, #tpu.memory_space<smem>>
    %c91 = arith.constant 91 : index
    %538 = memref.load %arg4[%c91] : memref<98xf32, #tpu.memory_space<smem>>
    %539 = vector.broadcast %537 : f32 to vector<2x1xf32>
    %540 = vector.broadcast %538 : f32 to vector<2x1xf32>
    %541 = arith.select %58, %539, %540 : vector<2x1xi1>, vector<2x1xf32>
    %542 = vector.broadcast %541 : vector<2x1xf32> to vector<2x256xf32>
    %543 = arith.mulf %542, %68 : vector<2x256xf32>
    %544 = arith.addf %536, %543 : vector<2x256xf32>
    %c43 = arith.constant 43 : index
    %545 = memref.load %arg4[%c43] : memref<98xf32, #tpu.memory_space<smem>>
    %c92 = arith.constant 92 : index
    %546 = memref.load %arg4[%c92] : memref<98xf32, #tpu.memory_space<smem>>
    %547 = vector.broadcast %545 : f32 to vector<2x1xf32>
    %548 = vector.broadcast %546 : f32 to vector<2x1xf32>
    %549 = arith.select %58, %547, %548 : vector<2x1xi1>, vector<2x1xf32>
    %550 = vector.broadcast %549 : vector<2x1xf32> to vector<2x256xf32>
    %551 = arith.mulf %550, %78 : vector<2x256xf32>
    %552 = arith.addf %544, %551 : vector<2x256xf32>
    %c44 = arith.constant 44 : index
    %553 = memref.load %arg4[%c44] : memref<98xf32, #tpu.memory_space<smem>>
    %c93 = arith.constant 93 : index
    %554 = memref.load %arg4[%c93] : memref<98xf32, #tpu.memory_space<smem>>
    %555 = vector.broadcast %553 : f32 to vector<2x1xf32>
    %556 = vector.broadcast %554 : f32 to vector<2x1xf32>
    %557 = arith.select %58, %555, %556 : vector<2x1xi1>, vector<2x1xf32>
    %558 = vector.broadcast %557 : vector<2x1xf32> to vector<2x256xf32>
    %559 = arith.mulf %558, %88 : vector<2x256xf32>
    %560 = arith.addf %552, %559 : vector<2x256xf32>
    %c45 = arith.constant 45 : index
    %561 = memref.load %arg4[%c45] : memref<98xf32, #tpu.memory_space<smem>>
    %c94 = arith.constant 94 : index
    %562 = memref.load %arg4[%c94] : memref<98xf32, #tpu.memory_space<smem>>
    %563 = vector.broadcast %561 : f32 to vector<2x1xf32>
    %564 = vector.broadcast %562 : f32 to vector<2x1xf32>
    %565 = arith.select %58, %563, %564 : vector<2x1xi1>, vector<2x1xf32>
    %566 = vector.broadcast %565 : vector<2x1xf32> to vector<2x256xf32>
    %567 = arith.mulf %566, %97 : vector<2x256xf32>
    %568 = arith.addf %560, %567 : vector<2x256xf32>
    %c46 = arith.constant 46 : index
    %569 = memref.load %arg4[%c46] : memref<98xf32, #tpu.memory_space<smem>>
    %c95 = arith.constant 95 : index
    %570 = memref.load %arg4[%c95] : memref<98xf32, #tpu.memory_space<smem>>
    %571 = vector.broadcast %569 : f32 to vector<2x1xf32>
    %572 = vector.broadcast %570 : f32 to vector<2x1xf32>
    %573 = arith.select %58, %571, %572 : vector<2x1xi1>, vector<2x1xf32>
    %574 = vector.broadcast %573 : vector<2x1xf32> to vector<2x256xf32>
    %575 = arith.mulf %574, %107 : vector<2x256xf32>
    %576 = arith.addf %568, %575 : vector<2x256xf32>
    %c47 = arith.constant 47 : index
    %577 = memref.load %arg4[%c47] : memref<98xf32, #tpu.memory_space<smem>>
    %c96 = arith.constant 96 : index
    %578 = memref.load %arg4[%c96] : memref<98xf32, #tpu.memory_space<smem>>
    %579 = vector.broadcast %577 : f32 to vector<2x1xf32>
    %580 = vector.broadcast %578 : f32 to vector<2x1xf32>
    %581 = arith.select %58, %579, %580 : vector<2x1xi1>, vector<2x1xf32>
    %582 = vector.broadcast %581 : vector<2x1xf32> to vector<2x256xf32>
    %583 = arith.mulf %582, %117 : vector<2x256xf32>
    %584 = arith.addf %576, %583 : vector<2x256xf32>
    %c48 = arith.constant 48 : index
    %585 = memref.load %arg4[%c48] : memref<98xf32, #tpu.memory_space<smem>>
    %c97 = arith.constant 97 : index
    %586 = memref.load %arg4[%c97] : memref<98xf32, #tpu.memory_space<smem>>
    %587 = vector.broadcast %585 : f32 to vector<2x1xf32>
    %588 = vector.broadcast %586 : f32 to vector<2x1xf32>
    %589 = arith.select %58, %587, %588 : vector<2x1xi1>, vector<2x1xf32>
    %590 = vector.broadcast %589 : vector<2x1xf32> to vector<2x256xf32>
    %591 = arith.mulf %590, %127 : vector<2x256xf32>
    %592 = arith.addf %584, %591 : vector<2x256xf32>
    %c208_i32 = arith.constant 208 : i32
    %593 = tpu.dynamic_rotate %592 by %c208_i32 dim 1 : vector<2x256xf32>, i32 -> vector<2x256xf32>
    %c-48_i32 = arith.constant -48 : i32
    %594 = vector.broadcast %c-48_i32 : i32 to vector<1x256xi32>
    %595 = arith.cmpi sge, %39, %594 : vector<1x256xi32>
    %c208_i32_60 = arith.constant 208 : i32
    %596 = vector.broadcast %c208_i32_60 : i32 to vector<1x256xi32>
    %597 = arith.cmpi slt, %39, %596 : vector<1x256xi32>
    %598 = arith.andi %595, %597 : vector<1x256xi1>
    %cst_61 = arith.constant 0.000000e+00 : f32
    %599 = vector.shape_cast %598 : vector<1x256xi1> to vector<1x256xi1>
    %600 = vector.broadcast %599 : vector<1x256xi1> to vector<2x256xi1>
    %601 = vector.broadcast %cst_61 : f32 to vector<2x256xf32>
    %602 = arith.select %600, %593, %601 : vector<2x256xi1>, vector<2x256xf32>
    %603 = arith.addf %535, %602 : vector<2x256xf32>
    %604 = vector.extract_strided_slice %603 {offsets = [0, 0], sizes = [1, 256], strides = [1, 1]} : vector<2x256xf32> to vector<1x256xf32>
    %605 = vector.extract_strided_slice %603 {offsets = [1, 0], sizes = [1, 256], strides = [1, 1]} : vector<2x256xf32> to vector<1x256xf32>
    %606 = arith.addf %604, %605 : vector<1x256xf32>
    %607 = arith.negf %606 : vector<1x256xf32>
    %608 = math.exp %607 : vector<1x256xf32>
    %cst_62 = arith.constant 1.000000e+00 : f32
    %609 = vector.broadcast %cst_62 : f32 to vector<1x256xf32>
    %610 = arith.addf %609, %608 : vector<1x256xf32>
    %611 = arith.divf %609, %610 : vector<1x256xf32>
    %612 = vector.shape_cast %611 : vector<1x256xf32> to vector<1x1x256xf32>
    %c0_63 = arith.constant 0 : index
    %c0_64 = arith.constant 0 : index
    %c0_65 = arith.constant 0 : index
    %613 = vector.load %arg1[%c0_63, %c0_64, %c0_65] : memref<1x4x256xf32, #tpu.memory_space<vmem>>, vector<1x4x256xf32>
    %614 = vector.broadcast %30 : vector<1x4x1xf32> to vector<1x4x256xf32>
    %615 = arith.mulf %613, %614 : vector<1x4x256xf32>
    %616 = vector.broadcast %612 : vector<1x1x256xf32> to vector<1x4x256xf32>
    %617 = arith.mulf %615, %616 : vector<1x4x256xf32>
    %c0_66 = arith.constant 0 : index
    %c0_67 = arith.constant 0 : index
    %c0_68 = arith.constant 0 : index
    %618 = vector.load %arg5[%c0_66, %c0_67, %c0_68] : memref<1x4x256xf32, #tpu.memory_space<vmem>>, vector<1x4x256xf32>
    tpu.vector_store %arg5[%c0_66, %c0_67, %c0_68], %617 {strides = array<i32>} : memref<1x4x256xf32, #tpu.memory_space<vmem>>, vector<1x4x256xf32>,
    return
  }
  func.func @transform_0(%arg0: i32) -> (i32, i32, i32) {
    %c0_i32 = arith.constant 0 : i32
    %c0_i32_0 = arith.constant 0 : i32
    %c0_i32_1 = arith.constant 0 : i32
    return %arg0, %c0_i32, %c0_i32_0 : i32, i32, i32
  }
  func.func @transform_1(%arg0: i32) -> (i32, i32) {
    %c0_i32 = arith.constant 0 : i32
    %c0_i32_0 = arith.constant 0 : i32
    %c0_i32_1 = arith.constant 0 : i32
    return %c0_i32, %c0_i32_0 : i32, i32
  }
  func.func @transform_2(%arg0: i32) -> (i32, i32) {
    %c0_i32 = arith.constant 0 : i32
    %c0_i32_0 = arith.constant 0 : i32
    %c0_i32_1 = arith.constant 0 : i32
    return %c0_i32, %c0_i32_0 : i32, i32
  }
  func.func @transform_3(%arg0: i32) -> i32 {
    %c0_i32 = arith.constant 0 : i32
    %c0_i32_0 = arith.constant 0 : i32
    return %c0_i32 : i32
  }
  func.func @transform_4(%arg0: i32) -> (i32, i32, i32) {
    %c0_i32 = arith.constant 0 : i32
    %c0_i32_0 = arith.constant 0 : i32
    %c0_i32_1 = arith.constant 0 : i32
    return %arg0, %c0_i32, %c0_i32_0 : i32, i32, i32
  }
}

</mosaic_0001>

<llo_original>
// kernel: tpu_custom_call.1
$region0: #{tpu_custom_call.1}
  #allocation0 [shape = 'u32[]', space=smem, size = 0x4, offset = 0x4, fixed_abs, tag = 'smem constant byte address 0x4 - core index']
  #allocation1 [shape = 'u32[144,128]{1,0:T(1,128)}', space=vmem, size = 0x12000, scoped, tag = 'internal scratch']
  %s0 = inlined_call_operand.hbm [shape: f32[2,4,256], index: 0, kind: input, shape index: {}]
  %s1 = inlined_call_operand.vmem [shape: f32[2,4], index: 1, kind: input, shape index: {}]
  %s2 = inlined_call_operand.vmem [shape: f32[4,2], index: 2, kind: input, shape index: {}]
  %s3 = inlined_call_operand.vmem [shape: f32[98], index: 3, kind: input, shape index: {}]
  %s4 = inlined_call_operand.hbm [shape: f32[2,4,256], index: 4, kind: output, shape index: {}]
  %s5 = sld [smem:[#allocation0]]
  $region57: #{tpu_custom_call.1} parent=0
    _
  %s7 = ssub.s32 1, %s5
  %s8 = scalar_select 0, %s7, %s5
  $region1: #{tpu_custom_call.1} parent=0
    #allocation2 [shape = 'u8[8192]{0}', space=vmem, size = 0x2000, scoped, tag = 'input window, operand 0']
    #allocation3 [shape = 's32[2]{0}', space=sflag, size = 0x8, scoped, tag = 'scoped memory for tpu_custom_call.1']
    #allocation4 [shape = 's32[2]{0}', space=sflag, size = 0x8, scoped, tag = 'scoped memory for tpu_custom_call.1']
    #allocation5 [shape = 's32[2]{0}', space=sflag, size = 0x8, scoped, tag = 'scoped memory for tpu_custom_call.1']
    #allocation6 [shape = 'u8[512]{0}', space=smem, size = 0x200, scoped, tag = 'input window, operand 3, single buffered']
    #allocation7 [shape = 'u8[8192]{0}', space=vmem, size = 0x2000, scoped, tag = 'output window, operand 0']
    %9 = vsyncpa [#allocation3], 0
    %s10 = scalar_lea.sflag [#allocation3], 1
    %11 = vsyncpa %s10, 0
    %12 = vsyncpa [#allocation5], 0
    %13 = vsyncpa [#allocation4], 0
    %s14 = scalar_lea.sflag [#allocation4], 1
    %15 = vsyncpa %s14, 0
    loop: start=0, step=1, limit=4
    $region2: #{tpu_custom_call.1} parent=1 // loop_pre_header
      _
    $region3: #{tpu_custom_call.1} parent=1 // loop_header
      %s17 = sphi 0, %s21
      %p18 = scmp.ge.s32.totalorder %s17, 4
      %s27 = sphi 0, %s29
      %s30 = sphi 0, %s27
      %s31 = sphi 0, %s30
      %s47 = sphi 0, %s31
      %s51 = sphi 0, %s51
      %s53 = sphi 0, %s51
      %s54 = sphi 0, %s53
      %s68 = sphi 0, %s54
      %s72 = sphi 0, %s72
      %s74 = sphi 0, %s72
      %s75 = sphi 0, %s74
      %s89 = sphi 0, %s75
      %s93 = sphi 0, %s93
      %s95 = sphi 0, %s93
      %s96 = sphi 0, %s95
      %s110 = sphi 0, %s96
      %s116 = sphi 0, %s118
      %s119 = sphi 0, %s116
      %s120 = sphi 0, %s119
      %s136 = sphi 0, %s120
    $region4: #{tpu_custom_call.1} parent=1 // loop_header_branch
      %20 = sbr.rel (%p18) target = $region8
    $region5: #{tpu_custom_call.1} parent=1 // loop_body
      %s22 = ssub.s32 %s17, 1
      %s23 = ssub.s32 %s17, 2
      %s24 = sadd.s32 %s17, 1
      %s25 = ssub.s32 %s17, %s24
      %p26 = scmp.eq.s32.totalorder %s25, 0
      %s28 = sadd.s32 %s27, 1
      %s29 = scalar_select %p26, %s27, %s28
      %p32 = pneg %p26
      %p33 = scmp.eq.s32.totalorder %s17, 1
      %p34 = por %p32, %p33
      %p35 = scmp.ne.s32.totalorder %s27, %s30
      %p36 = scmp.eq.s32.totalorder %s17, 0
      %p37 = por %p35, %p36
      %p38 = scmp.ne.s32.totalorder %s27, %s30
      %p39 = scmp.eq.s32.totalorder %s22, 1
      %p40 = por %p38, %p39
      %p41 = scmp.ne.s32.totalorder %s30, %s31
      %p42 = scmp.eq.s32.totalorder %s22, 0
      %p43 = por %p41, %p42
      %p44 = scmp.ne.s32.totalorder %s30, %s31
      %p45 = scmp.eq.s32.totalorder %s23, 1
      %p46 = por %p44, %p45
      %p48 = scmp.ne.s32.totalorder %s31, %s47
      %p49 = scmp.eq.s32.totalorder %s23, 0
      %p50 = por %p48, %p49
      %s52 = sadd.s32 %s51, 1
      %p55 = scmp.eq.s32.totalorder %s17, 1
      %p56 = scmp.ne.s32.totalorder %s51, %s53
      %p57 = scmp.eq.s32.totalorder %s17, 0
      %p58 = por %p56, %p57
      %p59 = scmp.ne.s32.totalorder %s51, %s53
      %p60 = scmp.eq.s32.totalorder %s22, 1
      %p61 = por %p59, %p60
      %p62 = scmp.ne.s32.totalorder %s53, %s54
      %p63 = scmp.eq.s32.totalorder %s22, 0
      %p64 = por %p62, %p63
      %p65 = scmp.ne.s32.totalorder %s53, %s54
      %p66 = scmp.eq.s32.totalorder %s23, 1
      %p67 = por %p65, %p66
      %p69 = scmp.ne.s32.totalorder %s54, %s68
      %p70 = scmp.eq.s32.totalorder %s23, 0
      %p71 = por %p69, %p70
      %s73 = sadd.s32 %s72, 1
      %p76 = scmp.eq.s32.totalorder %s17, 1
      %p77 = scmp.ne.s32.totalorder %s72, %s74
      %p78 = scmp.eq.s32.totalorder %s17, 0
      %p79 = por %p77, %p78
      %p80 = scmp.ne.s32.totalorder %s72, %s74
      %p81 = scmp.eq.s32.totalorder %s22, 1
      %p82 = por %p80, %p81
      %p83 = scmp.ne.s32.totalorder %s74, %s75
      %p84 = scmp.eq.s32.totalorder %s22, 0
      %p85 = por %p83, %p84
      %p86 = scmp.ne.s32.totalorder %s74, %s75
      %p87 = scmp.eq.s32.totalorder %s23, 1
      %p88 = por %p86, %p87
      %p90 = scmp.ne.s32.totalorder %s75, %s89
      %p91 = scmp.eq.s32.totalorder %s23, 0
      %p92 = por %p90, %p91
      %s94 = sadd.s32 %s93, 1
      %p97 = scmp.eq.s32.totalorder %s17, 1
      %p98 = scmp.ne.s32.totalorder %s93, %s95
      %p99 = scmp.eq.s32.totalorder %s17, 0
      %p100 = por %p98, %p99
      %p101 = scmp.ne.s32.totalorder %s93, %s95
      %p102 = scmp.eq.s32.totalorder %s22, 1
      %p103 = por %p101, %p102
      %p104 = scmp.ne.s32.totalorder %s95, %s96
      %p105 = scmp.eq.s32.totalorder %s22, 0
      %p106 = por %p104, %p105
      %p107 = scmp.ne.s32.totalorder %s95, %s96
      %p108 = scmp.eq.s32.totalorder %s23, 1
      %p109 = por %p107, %p108
      %p111 = scmp.ne.s32.totalorder %s96, %s110
      %p112 = scmp.eq.s32.totalorder %s23, 0
      %p113 = por %p111, %p112
      %s114 = ssub.s32 %s17, %s24
      %p115 = scmp.eq.s32.totalorder %s114, 0
      %s117 = sadd.s32 %s116, 1
      %s118 = scalar_select %p115, %s116, %s117
      %p121 = pneg %p115
      %p122 = scmp.eq.s32.totalorder %s17, 1
      %p123 = por %p121, %p122
      %p124 = scmp.ne.s32.totalorder %s116, %s119
      %p125 = scmp.eq.s32.totalorder %s17, 0
      %p126 = por %p124, %p125
      %p127 = scmp.ne.s32.totalorder %s116, %s119
      %p128 = scmp.eq.s32.totalorder %s22, 1
      %p129 = por %p127, %p128
      %p130 = scmp.ne.s32.totalorder %s119, %s120
      %p131 = scmp.eq.s32.totalorder %s22, 0
      %p132 = por %p130, %p131
      %p133 = scmp.ne.s32.totalorder %s119, %s120
      %p134 = scmp.eq.s32.totalorder %s23, 1
      %p135 = por %p133, %p134
      %p137 = scmp.ne.s32.totalorder %s120, %s136
      %p138 = scmp.eq.s32.totalorder %s23, 0
      %p139 = por %p137, %p138
      %p140 = scmp.le.s32.totalorder 1, %s17
      %p141 = scmp.lt.s32.totalorder %s17, 3
      %p142 = pnand %p140, %p141
      %p143 = pneg %p142
      // Predicated region
      $region9: #{tpu_custom_call.1} parent=5 // pred_check
        _
      $region10: #{tpu_custom_call.1} parent=5 // pred_check_branch
        %145 = sbr.rel (%p142) target = $region12
      $region11: #{tpu_custom_call.1} parent=5 // pred_region
        %s146 = ssub.s32 %s17, 1
        // Predicated region
        $region13: #{tpu_custom_call.1} parent=11 // pred_check
          %p147 = pneg %p64
        $region14: #{tpu_custom_call.1} parent=11 // pred_check_branch
          %149 = sbr.rel (%p147) target = $region16
        $region15: #{tpu_custom_call.1} parent=11 // pred_region
          _
        $region16: #{tpu_custom_call.1} parent=11 // pred_fallthru
          _
        // Predicated region
        $region17: #{tpu_custom_call.1} parent=11 // pred_check
          %p150 = pneg %p85
        $region18: #{tpu_custom_call.1} parent=11 // pred_check_branch
          %152 = sbr.rel (%p150) target = $region20
        $region19: #{tpu_custom_call.1} parent=11 // pred_region
          _
        $region20: #{tpu_custom_call.1} parent=11 // pred_fallthru
          _
        // Predicated region
        $region21: #{tpu_custom_call.1} parent=11 // pred_check
          %p153 = pneg %p106
        $region22: #{tpu_custom_call.1} parent=11 // pred_check_branch
          %155 = sbr.rel (%p153) target = $region24
        $region23: #{tpu_custom_call.1} parent=11 // pred_region
          %s157 = ssub.s32 16, 16
          %158 = vsyncadd [#allocation5], %s157
          %s160 = sshll.u32 %s3, 4
          %s161 = int_to_ptr.vmem [resolvable:$true] %s160
          %163 = dma.vmem_to_smem %s161, 16, [#allocation6], [#allocation5]
        $region24: #{tpu_custom_call.1} parent=11 // pred_fallthru
          _
      $region12: #{tpu_custom_call.1} parent=5 // pred_fallthru
        _
      %p164 = scmp.lt.s32.totalorder %s17, 2
      // Predicated region
      $region25: #{tpu_custom_call.1} parent=5 // pred_check
        %p165 = pneg %p164
      $region26: #{tpu_custom_call.1} parent=5 // pred_check_branch
        %167 = sbr.rel (%p165) target = $region28
      $region27: #{tpu_custom_call.1} parent=5 // pred_region
        // Predicated region
        $region29: #{tpu_custom_call.1} parent=27 // pred_check
          %p168 = pneg %p37
        $region30: #{tpu_custom_call.1} parent=27 // pred_check_branch
          %170 = sbr.rel (%p168) target = $region32
        $region31: #{tpu_custom_call.1} parent=27 // pred_region
          %s171 = sand.u32 %s27, 1
          %s172 = scalar_lea.sflag [#allocation3], %s171
          %s173 = sand.u32 %s27, 1
          %s174 = smul.addr %s173, 8
          %s175 = scalar_lea.vmem [#allocation2], %s174
          %s177 = ssub.s32 128, 128
          %178 = vsyncadd %s172, %s177
          %s179 = smul.addr %s17, 2
          %s180 = smul.addr %s179, 64
          %s181 = scalar_lea.hbm %s0, %s180
          %s183 = sshll.u32 %s175, 4
          %s184 = int_to_ptr.vmem [resolvable:$true] %s183
          %186 = dma.hbm_to_vmem [thread:$0]  %s181, 128, %s184, %s172
        $region32: #{tpu_custom_call.1} parent=27 // pred_fallthru
          _
      $region28: #{tpu_custom_call.1} parent=5 // pred_fallthru
        _
      %p187 = scmp.le.s32.totalorder 1, %s17
      %p188 = scmp.lt.s32.totalorder %s17, 3
      %p189 = pnand %p187, %p188
      %p190 = pneg %p189
      // Predicated region
      $region33: #{tpu_custom_call.1} parent=5 // pred_check
        _
      $region34: #{tpu_custom_call.1} parent=5 // pred_check_branch
        %192 = sbr.rel (%p189) target = $region36
      $region35: #{tpu_custom_call.1} parent=5 // pred_region
        %s193 = ssub.s32 %s17, 1
        %s194 = sand.u32 %s30, 1
        %s195 = scalar_lea.sflag [#allocation3], %s194
        %s196 = sand.u32 %s30, 1
        %s197 = smul.addr %s196, 8
        %s198 = scalar_lea.vmem [#allocation2], %s197
        // Predicated region
        $region37: #{tpu_custom_call.1} parent=35 // pred_check
          %p199 = pneg %p43
        $region38: #{tpu_custom_call.1} parent=35 // pred_check_branch
          %201 = sbr.rel (%p199) target = $region40
        $region39: #{tpu_custom_call.1} parent=35 // pred_region
          %202 = dma.done %s195, 128
        $region40: #{tpu_custom_call.1} parent=35 // pred_fallthru
          _
        // Predicated region
        $region41: #{tpu_custom_call.1} parent=35 // pred_check
          %p203 = pneg %p106
        $region42: #{tpu_custom_call.1} parent=35 // pred_check_branch
          %205 = sbr.rel (%p203) target = $region44
        $region43: #{tpu_custom_call.1} parent=35 // pred_region
          %206 = dma.done [#allocation5], 16
        $region44: #{tpu_custom_call.1} parent=35 // pred_fallthru
          _
        %207 = sfence
        %s208 = sand.u32 %s30, 1
        %s209 = scalar_lea.sflag [#allocation3], %s208
        %s210 = sand.u32 %s30, 1
        %s211 = smul.addr %s210, 8
        %s212 = scalar_lea.vmem [#allocation2], %s211
        %p213 = pneg %p43
        %p214 = pneg %p40
        %p215 = pneg %p64
        %p216 = pneg %p61
        %p217 = pneg %p85
        %p218 = pneg %p82
        %p219 = pneg %p106
        %p220 = pneg %p103
        %p221 = pneg %p132
        %p222 = pneg %p129
        %s223 = sand.u32 %s119, 1
        %s224 = scalar_lea.sflag [#allocation4], %s223
        %s225 = sand.u32 %s119, 1
        %s226 = smul.addr %s225, 8
        %s227 = scalar_lea.vmem [#allocation7], %s226
        %v228 = vld [vmem:[%s198] sm:$0xff]
        %v230 = vcombine.high %v228, %v228
        %vm232 = vcmask 1043456
        %v233 = vsel %vm232, %v228, 0.0
        %v234 = vsel %vm232, %v230, 0.0
        %v235 = vadd.f32 %v233, %v234
        %236 = vadd.xlane.f32.xlu0 %v235
        %v237 = vpop.xlane.xlu0 %236
        %v238 = vsel %vm232, %v228, -inf
        %v239 = vsel %vm232, %v230, -inf
        %v240 = vmax.f32 %v238, %v239
        %241 = vmax.xlane.f32.xlu0 %v240
        %v242 = vpop.xlane.xlu0 %241
        %v243 = vmul.f32 %v237, 0.00390625
        %v245 = vlaneseq
        %v246 = vand.u32 %v245, 127
        %v247 = vlaneseq
        %v248 = vshrl.u32 %v247, 7
        %v249 = vsub.s32 %v246, %v248
        %v250 = vrot.slane %v243, %v249
        %v253 = vlaneseq
        %v254 = vshrl.u32 %v253, 7
        %v255 = vsub.s32 %v246, %v254
        %v256 = vrot.slane %v242, %v255
        %vm258 = vcmask 1040384
        %v259 = vsel %vm258, %v250, %v256
        %v260 = vld [vmem:[%s1] sm:$0x3]
        %v261 = vld [vmem:[%s2] sm:$0xf]
        %v264 = vunpack.c.l.s4 1966171168
        %v265 = vunpack.c.0.s8 %v264
        %v266 = vlaneseq
        %v267 = vshrl.u32 %v266, 7
        %v268 = vsub.s32 %v265, %v267
        %v269 = vrot.slane %v259, %v268
        %v270 = vcombine.high %v269, %v269
        %v272 = vunpack.c.l.s4 1966171168
        %v273 = vunpack.c.0.s8 %v272
        %v274 = vlaneseq
        %v275 = vshrl.u32 %v274, 7
        %v276 = vsub.s32 %v273, %v275
        %v277 = vrot.slane %v269, %v276
        %v279 = vunpack.c.l.s4 1966171168
        %v280 = vunpack.c.0.s8 %v279
        %v281 = vlaneseq
        %v282 = vshrl.u32 %v281, 7
        %v283 = vsub.s32 %v280, %v282
        %v284 = vrot.slane %v270, %v283
        %v285 = vlaneseq
        %v286 = vshrl.u32 %v285, 7
        %v287 = vsub.s32 0, %v286
        %v288 = vrot.slane %v277, %v287
        %v289 = vlaneseq
        %v290 = vshrl.u32 %v289, 7
        %v291 = vsub.s32 0, %v290
        %v292 = vrot.slane %v284, %v291
        %v295 = vmul.f32 %v288, %v260
        %v296 = vmul.f32 %v292, %v260
        %vm297 = vcmask 25600
        %v298 = vsel %vm297, %v295, 0.0
        %299 = vadd.xlane.f32.xlu0 %v298
        %v300 = vpop.xlane.xlu0 %299
        %v301 = vsel %vm297, %v296, 0.0
        %302 = vadd.xlane.f32.xlu0 %v301
        %v303 = vpop.xlane.xlu0 %302
        %v304 = vmax.f32 %v300, 0.0
        %v305 = vmax.f32 %v303, 0.0
        %v306 = vadd.f32 %v304, %v305
        %v308 = vlaneseq
        %v309 = vshrl.u32 %v308, 7
        %v310 = vsub.s32 0, %v309
        %v311 = vrot.slane %v261, %v310
        %313 = vbcast.lane.b32.xlu0 %v311, 256
        %v314 = vpop.permute.xlu0 %313
        %v315 = vlaneseq
        %v316 = vshrl.u32 %v315, 7
        %v317 = vsub.s32 1, %v316
        %v318 = vrot.slane %v261, %v317
        %320 = vbcast.lane.b32.xlu0 %v318, 256
        %v321 = vpop.permute.xlu0 %320
        %v322 = vlaneseq
        %v323 = vshrl.u32 %v322, 7
        %v324 = vsub.s32 2, %v323
        %v325 = vrot.slane %v261, %v324
        %327 = vbcast.lane.b32.xlu0 %v325, 256
        %v328 = vpop.permute.xlu0 %327
        %v329 = vlaneseq
        %v330 = vshrl.u32 %v329, 7
        %v331 = vsub.s32 3, %v330
        %v332 = vrot.slane %v261, %v331
        %334 = vbcast.lane.b32.xlu0 %v332, 256
        %v335 = vpop.permute.xlu0 %334
        %v340 = vmul.f32 %v306, %v314
        %v341 = vmul.f32 %v306, %v321
        %v342 = vmul.f32 %v306, %v328
        %v343 = vmul.f32 %v306, %v335
        %348 = vset.pattern.permute.xlu0 0
        %349 = vperm.xlu0 %348, %v340
        %v350 = vpop.permute.xlu0 %349
        %351 = vset.pattern.permute.xlu0 0
        %352 = vperm.xlu0 %351, %v341
        %v353 = vpop.permute.xlu0 %352
        %354 = vset.pattern.permute.xlu0 0
        %355 = vperm.xlu0 %354, %v342
        %v356 = vpop.permute.xlu0 %355
        %357 = vset.pattern.permute.xlu0 0
        %358 = vperm.xlu0 %357, %v343
        %v359 = vpop.permute.xlu0 %358
        %v360 = vlaneseq
        %v361 = vshrl.u32 %v360, 7
        %v362 = vsub.s32 %v246, %v361
        %v363 = vrot.slane %v350, %v362
        %v364 = vlaneseq
        %v365 = vshrl.u32 %v364, 7
        %v366 = vsub.s32 %v246, %v365
        %v367 = vrot.slane %v353, %v366
        %v368 = vlaneseq
        %v369 = vshrl.u32 %v368, 7
        %v370 = vsub.s32 %v246, %v369
        %v371 = vrot.slane %v356, %v370
        %v372 = vlaneseq
        %v373 = vshrl.u32 %v372, 7
        %v374 = vsub.s32 %v246, %v373
        %v375 = vrot.slane %v359, %v374
        %vm376 = vcmask 1041409
        %v377 = vsel %vm376, %v367, %v363
        %vm378 = vcmask 1042434
        %v379 = vsel %vm378, %v371, %v377
        %vm380 = vcmask 1043459
        %v381 = vsel %vm380, %v375, %v379
        %vm383 = vcmask 11264
        %v384 = vsel %vm383, %v381, 0.0
        %385 = vadd.xlane.f32.xlu0 %v384
        %v386 = vpop.xlane.xlu0 %385
        %v387 = vxor.u32 %v386, 2147483648
        %v388 = vmul.f32 %v387, 1.442695
        %v389 = vpow.pop %v388
        %v390 = vadd.f32 %v389, 1.0
        %v391 = vrcp.pop %v390
        %v392 = vmul.f32 1.0, %v391
        %v395 = vunpack.c.l.s4 839922192
        %v396 = vunpack.c.0.s8 %v395
        %v397 = vlaneseq
        %v398 = vshrl.u32 %v397, 7
        %v399 = vsub.s32 %v396, %v398
        %v400 = vrot.slane %v392, %v399
        %v402 = vmul.f32 %v228, %v400
        %v404 = vcombine.high %v402, %v402
        %v406 = vsel %vm232, %v402, 0.0
        %v407 = vrot.slane %v406, 4
        %v408 = vadd.f32 %v406, %v407
        %v409 = vrot.slane %v408, 2
        %v410 = vadd.f32 %v408, %v409
        %v411 = vrot.slane %v410, 1
        %v412 = vadd.f32 %v410, %v411
        %v413 = vsel %vm232, %v404, 0.0
        %v414 = vrot.slane %v413, 4
        %v415 = vadd.f32 %v413, %v414
        %v416 = vrot.slane %v415, 2
        %v417 = vadd.f32 %v415, %v416
        %v418 = vrot.slane %v417, 1
        %v419 = vadd.f32 %v417, %v418
        %v420 = vmul.f32 %v412, 0.25
        %v421 = vmul.f32 %v419, 0.25
        %v422 = vsel %vm232, %v402, -inf
        %v423 = vrot.slane %v422, 4
        %v424 = vmax.f32 %v422, %v423
        %v425 = vrot.slane %v424, 2
        %v426 = vmax.f32 %v424, %v425
        %v427 = vrot.slane %v426, 1
        %v428 = vmax.f32 %v426, %v427
        %v429 = vsel %vm232, %v404, -inf
        %v430 = vrot.slane %v429, 4
        %v431 = vmax.f32 %v429, %v430
        %v432 = vrot.slane %v431, 2
        %v433 = vmax.f32 %v431, %v432
        %v434 = vrot.slane %v433, 1
        %v435 = vmax.f32 %v433, %v434
        %v436 = vsel %vm258, %v420, %v428
        %v437 = vsel %vm258, %v421, %v435
        %v438 = vadd.s32 %v246, 128
        %vm439 = vcmp.lt.s32.totalorder %v246, 0
        %v440 = vsub.s32 0, %v246
        %v441 = vsel %vm439, %v440, %v246
        %v442 = vshrl.u32 %v441, 4
        %v443 = vand.u32 %v441, 15
        %v444 = vsub.s32 0, %v443
        %v445 = vsel %vm439, %v444, %v443
        %vm446 = vcmp.lt.s32.totalorder %v438, 0
        %v447 = vsub.s32 0, %v438
        %v448 = vsel %vm446, %v447, %v438
        %v449 = vshrl.u32 %v448, 4
        %v450 = vand.u32 %v448, 15
        %v451 = vsub.s32 0, %v450
        %v452 = vsel %vm446, %v451, %v450
        %vm453 = vcmp.ne.s32.totalorder %v445, 0
        %vm454 = vcmp.ne.s32.totalorder %v452, 0
        %vm455 = vcmp.lt.s32.totalorder %v445, 0
        %vm456 = vcmp.lt.s32.totalorder %v452, 0
        %vm457 = vmand %vm455, %vm453
        %vm458 = vmand %vm456, %vm454
        %v459 = vadd.s32 %v445, 16
        %v460 = vadd.s32 %v452, 16
        %v461 = vsel %vm457, %v459, %v445
        %v462 = vsel %vm458, %v460, %v452
        %v463 = vlaneseq
        %v464 = vshrl.u32 %v463, 7
        %vm465 = vcmp.lt.s32.totalorder %v464, 1
        %466 = vrot.lane.b32.xlu0 %v436, 3
        %v467 = vpop.permute.xlu0 %466
        %468 = vrot.lane.b32.xlu0 %v437, 3
        %v469 = vpop.permute.xlu0 %468
        %vm470 = vcmp.lt.s32.totalorder %v246, 3
        %v471 = vsel %vm470, %v467, %v469
        %v472 = vsel %vm470, %v469, %v467
        %vm473 = vcmp.ge.s32.totalorder %v461, 3
        %vm474 = vcmp.ge.s32.totalorder %v462, 3
        %vm475 = vcmp.le.s32.totalorder %v461, 18
        %vm476 = vcmp.le.s32.totalorder %v462, 18
        %vm477 = vmand %vm473, %vm475
        %vm478 = vmand %vm474, %vm476
        %v479 = vsel %vm477, 1, 0
        %v480 = vsel %vm478, 1, 0
        %vm481 = vcmp.eq.s32.totalorder %v479, 1
        %vm482 = vcmp.eq.s32.totalorder %v480, 1
        %v483 = vsel %vm481, %v472, 0.0
        %v484 = vsel %vm482, %v471, 0.0
        %485 = vrot.lane.b32.xlu0 %v436, 2
        %v486 = vpop.permute.xlu0 %485
        %487 = vrot.lane.b32.xlu0 %v437, 2
        %v488 = vpop.permute.xlu0 %487
        %vm489 = vcmp.lt.s32.totalorder %v246, 2
        %v490 = vsel %vm489, %v486, %v488
        %v491 = vsel %vm489, %v488, %v486
        %vm492 = vcmp.ge.s32.totalorder %v461, 2
        %vm493 = vcmp.ge.s32.totalorder %v462, 2
        %vm494 = vcmp.le.s32.totalorder %v461, 17
        %vm495 = vcmp.le.s32.totalorder %v462, 17
        %vm496 = vmand %vm492, %vm494
        %vm497 = vmand %vm493, %vm495
        %v498 = vsel %vm496, 1, 0
        %v499 = vsel %vm497, 1, 0
        %vm500 = vcmp.eq.s32.totalorder %v498, 1
        %vm501 = vcmp.eq.s32.totalorder %v499, 1
        %v502 = vsel %vm500, %v491, 0.0
        %v503 = vsel %vm501, %v490, 0.0
        %504 = vrot.lane.b32.xlu0 %v436, 1
        %v505 = vpop.permute.xlu0 %504
        %506 = vrot.lane.b32.xlu0 %v437, 1
        %v507 = vpop.permute.xlu0 %506
        %vm508 = vcmp.lt.s32.totalorder %v246, 1
        %v509 = vsel %vm508, %v505, %v507
        %v510 = vsel %vm508, %v507, %v505
        %vm511 = vcmp.ge.s32.totalorder %v461, 1
        %vm512 = vcmp.ge.s32.totalorder %v462, 1
        %vm513 = vcmp.le.s32.totalorder %v461, 16
        %vm514 = vcmp.le.s32.totalorder %v462, 16
        %vm515 = vmand %vm511, %vm513
        %vm516 = vmand %vm512, %vm514
        %v517 = vsel %vm515, 1, 0
        %v518 = vsel %vm516, 1, 0
        %vm519 = vcmp.eq.s32.totalorder %v517, 1
        %vm520 = vcmp.eq.s32.totalorder %v518, 1
        %v521 = vsel %vm519, %v510, 0.0
        %v522 = vsel %vm520, %v509, 0.0
        %vm523 = vcmp.ge.s32.totalorder %v461, 0
        %vm524 = vcmp.ge.s32.totalorder %v462, 0
        %vm525 = vcmp.le.s32.totalorder %v461, 15
        %vm526 = vcmp.le.s32.totalorder %v462, 15
        %vm527 = vmand %vm523, %vm525
        %vm528 = vmand %vm524, %vm526
        %v529 = vsel %vm527, 1, 0
        %v530 = vsel %vm528, 1, 0
        %vm531 = vcmp.eq.s32.totalorder %v529, 1
        %vm532 = vcmp.eq.s32.totalorder %v530, 1
        %v533 = vsel %vm531, %v436, 0.0
        %v534 = vsel %vm532, %v437, 0.0
        %535 = vrot.lane.b32.xlu0 %v436, 127
        %v536 = vpop.permute.xlu0 %535
        %537 = vrot.lane.b32.xlu0 %v437, 127
        %v538 = vpop.permute.xlu0 %537
        %vm539 = vcmp.lt.s32.totalorder %v246, 127
        %v540 = vsel %vm539, %v536, %v538
        %v541 = vsel %vm539, %v538, %v536
        %vm542 = vcmp.ge.s32.totalorder %v461, 4294967295
        %vm543 = vcmp.ge.s32.totalorder %v462, 4294967295
        %vm544 = vcmp.le.s32.totalorder %v461, 14
        %vm545 = vcmp.le.s32.totalorder %v462, 14
        %vm546 = vmand %vm542, %vm544
        %vm547 = vmand %vm543, %vm545
        %v548 = vsel %vm546, 1, 0
        %v549 = vsel %vm547, 1, 0
        %vm550 = vcmp.eq.s32.totalorder %v548, 1
        %vm551 = vcmp.eq.s32.totalorder %v549, 1
        %v552 = vsel %vm550, %v540, 0.0
        %v553 = vsel %vm551, %v541, 0.0
        %554 = vrot.lane.b32.xlu0 %v436, 126
        %v555 = vpop.permute.xlu0 %554
        %556 = vrot.lane.b32.xlu0 %v437, 126
        %v557 = vpop.permute.xlu0 %556
        %vm558 = vcmp.lt.s32.totalorder %v246, 126
        %v559 = vsel %vm558, %v555, %v557
        %v560 = vsel %vm558, %v557, %v555
        %vm561 = vcmp.ge.s32.totalorder %v461, 4294967294
        %vm562 = vcmp.ge.s32.totalorder %v462, 4294967294
        %vm563 = vcmp.le.s32.totalorder %v461, 13
        %vm564 = vcmp.le.s32.totalorder %v462, 13
        %vm565 = vmand %vm561, %vm563
        %vm566 = vmand %vm562, %vm564
        %v567 = vsel %vm565, 1, 0
        %v568 = vsel %vm566, 1, 0
        %vm569 = vcmp.eq.s32.totalorder %v567, 1
        %vm570 = vcmp.eq.s32.totalorder %v568, 1
        %v571 = vsel %vm569, %v559, 0.0
        %v572 = vsel %vm570, %v560, 0.0
        %573 = vrot.lane.b32.xlu0 %v436, 125
        %v574 = vpop.permute.xlu0 %573
        %575 = vrot.lane.b32.xlu0 %v437, 125
        %v576 = vpop.permute.xlu0 %575
        %vm577 = vcmp.lt.s32.totalorder %v246, 125
        %v578 = vsel %vm577, %v574, %v576
        %v579 = vsel %vm577, %v576, %v574
        %vm580 = vcmp.ge.s32.totalorder %v461, 4294967293
        %vm581 = vcmp.ge.s32.totalorder %v462, 4294967293
        %vm582 = vcmp.le.s32.totalorder %v461, 12
        %vm583 = vcmp.le.s32.totalorder %v462, 12
        %vm584 = vmand %vm580, %vm582
        %vm585 = vmand %vm581, %vm583
        %v586 = vsel %vm584, 1, 0
        %v587 = vsel %vm585, 1, 0
        %vm588 = vcmp.eq.s32.totalorder %v586, 1
        %vm589 = vcmp.eq.s32.totalorder %v587, 1
        %v590 = vsel %vm588, %v578, 0.0
        %v591 = vsel %vm589, %v579, 0.0
        %s592 = sld [smem:[#allocation6]]
        %s593 = sld [smem:[#allocation6 + $0x31]]
        %v594 = vstv %s592
        %v595 = vstv %s593
        %v596 = vsel %vm465, %v594, %v595
        %v597 = vmul.f32 %v596, %v483
        %v598 = vmul.f32 %v596, %v484
        %v599 = vadd.f32 %v597, 0.0
        %v600 = vadd.f32 %v598, 0.0
        %s601 = sld [smem:[#allocation6 + $0x1]]
        %s602 = sld [smem:[#allocation6 + $0x32]]
        %v603 = vstv %s601
        %v604 = vstv %s602
        %v605 = vsel %vm465, %v603, %v604
        %v606 = vmul.f32 %v605, %v502
        %v607 = vmul.f32 %v605, %v503
        %v608 = vadd.f32 %v599, %v606
        %v609 = vadd.f32 %v600, %v607
        %s610 = sld [smem:[#allocation6 + $0x2]]
        %s611 = sld [smem:[#allocation6 + $0x33]]
        %v612 = vstv %s610
        %v613 = vstv %s611
        %v614 = vsel %vm465, %v612, %v613
        %v615 = vmul.f32 %v614, %v521
        %v616 = vmul.f32 %v614, %v522
        %v617 = vadd.f32 %v608, %v615
        %v618 = vadd.f32 %v609, %v616
        %s619 = sld [smem:[#allocation6 + $0x3]]
        %s620 = sld [smem:[#allocation6 + $0x34]]
        %v621 = vstv %s619
        %v622 = vstv %s620
        %v623 = vsel %vm465, %v621, %v622
        %v624 = vmul.f32 %v623, %v533
        %v625 = vmul.f32 %v623, %v534
        %v626 = vadd.f32 %v617, %v624
        %v627 = vadd.f32 %v618, %v625
        %s628 = sld [smem:[#allocation6 + $0x4]]
        %s629 = sld [smem:[#allocation6 + $0x35]]
        %v630 = vstv %s628
        %v631 = vstv %s629
        %v632 = vsel %vm465, %v630, %v631
        %v633 = vmul.f32 %v632, %v552
        %v634 = vmul.f32 %v632, %v553
        %v635 = vadd.f32 %v626, %v633
        %v636 = vadd.f32 %v627, %v634
        %s637 = sld [smem:[#allocation6 + $0x5]]
        %s638 = sld [smem:[#allocation6 + $0x36]]
        %v639 = vstv %s637
        %v640 = vstv %s638
        %v641 = vsel %vm465, %v639, %v640
        %v642 = vmul.f32 %v641, %v571
        %v643 = vmul.f32 %v641, %v572
        %v644 = vadd.f32 %v635, %v642
        %v645 = vadd.f32 %v636, %v643
        %s646 = sld [smem:[#allocation6 + $0x6]]
        %s647 = sld [smem:[#allocation6 + $0x37]]
        %v648 = vstv %s646
        %v649 = vstv %s647
        %v650 = vsel %vm465, %v648, %v649
        %v651 = vmul.f32 %v650, %v590
        %v652 = vmul.f32 %v650, %v591
        %v653 = vadd.f32 %v644, %v651
        %v654 = vadd.f32 %v645, %v652
        %655 = vrot.lane.b32.xlu0 %v653, 48
        %v656 = vpop.permute.xlu0 %655
        %657 = vrot.lane.b32.xlu0 %v654, 48
        %v658 = vpop.permute.xlu0 %657
        %vm659 = vcmp.lt.s32.totalorder %v246, 48
        %v660 = vsel %vm659, %v656, %v658
        %v661 = vsel %vm659, %v658, %v656
        %vm662 = vcmp.ge.s32.totalorder %v246, 48
        %vm663 = vcmp.ge.s32.totalorder %v438, 48
        %vm664 = vcmp.lt.s32.totalorder %v246, 304
        %vm665 = vcmp.lt.s32.totalorder %v438, 304
        %vm666 = vmand %vm662, %vm664
        %vm667 = vmand %vm663, %vm665
        %v668 = vsel %vm666, 1, 0
        %v669 = vsel %vm667, 1, 0
        %vm670 = vcmp.eq.s32.totalorder %v668, 1
        %vm671 = vcmp.eq.s32.totalorder %v669, 1
        %v672 = vsel %vm670, %v661, 0.0
        %v673 = vsel %vm671, %v660, 0.0
        %v674 = vadd.f32 %v672, 0.0
        %v675 = vadd.f32 %v673, 0.0
        %s676 = sld [smem:[#allocation6 + $0x7]]
        %s677 = sld [smem:[#allocation6 + $0x38]]
        %v678 = vstv %s676
        %v679 = vstv %s677
        %v680 = vsel %vm465, %v678, %v679
        %v681 = vmul.f32 %v680, %v483
        %v682 = vmul.f32 %v680, %v484
        %v683 = vadd.f32 %v681, 0.0
        %v684 = vadd.f32 %v682, 0.0
        %s685 = sld [smem:[#allocation6 + $0x8]]
        %s686 = sld [smem:[#allocation6 + $0x39]]
        %v687 = vstv %s685
        %v688 = vstv %s686
        %v689 = vsel %vm465, %v687, %v688
        %v690 = vmul.f32 %v689, %v502
        %v691 = vmul.f32 %v689, %v503
        %v692 = vadd.f32 %v683, %v690
        %v693 = vadd.f32 %v684, %v691
        %s694 = sld [smem:[#allocation6 + $0x9]]
        %s695 = sld [smem:[#allocation6 + $0x3a]]
        %v696 = vstv %s694
        %v697 = vstv %s695
        %v698 = vsel %vm465, %v696, %v697
        %v699 = vmul.f32 %v698, %v521
        %v700 = vmul.f32 %v698, %v522
        %v701 = vadd.f32 %v692, %v699
        %v702 = vadd.f32 %v693, %v700
        %s703 = sld [smem:[#allocation6 + $0xa]]
        %s704 = sld [smem:[#allocation6 + $0x3b]]
        %v705 = vstv %s703
        %v706 = vstv %s704
        %v707 = vsel %vm465, %v705, %v706
        %v708 = vmul.f32 %v707, %v533
        %v709 = vmul.f32 %v707, %v534
        %v710 = vadd.f32 %v701, %v708
        %v711 = vadd.f32 %v702, %v709
        %s712 = sld [smem:[#allocation6 + $0xb]]
        %s713 = sld [smem:[#allocation6 + $0x3c]]
        %v714 = vstv %s712
        %v715 = vstv %s713
        %v716 = vsel %vm465, %v714, %v715
        %v717 = vmul.f32 %v716, %v552
        %v718 = vmul.f32 %v716, %v553
        %v719 = vadd.f32 %v710, %v717
        %v720 = vadd.f32 %v711, %v718
        %s721 = sld [smem:[#allocation6 + $0xc]]
        %s722 = sld [smem:[#allocation6 + $0x3d]]
        %v723 = vstv %s721
        %v724 = vstv %s722
        %v725 = vsel %vm465, %v723, %v724
        %v726 = vmul.f32 %v725, %v571
        %v727 = vmul.f32 %v725, %v572
        %v728 = vadd.f32 %v719, %v726
        %v729 = vadd.f32 %v720, %v727
        %s730 = sld [smem:[#allocation6 + $0xd]]
        %s731 = sld [smem:[#allocation6 + $0x3e]]
        %v732 = vstv %s730
        %v733 = vstv %s731
        %v734 = vsel %vm465, %v732, %v733
        %v735 = vmul.f32 %v734, %v590
        %v736 = vmul.f32 %v734, %v591
        %v737 = vadd.f32 %v728, %v735
        %v738 = vadd.f32 %v729, %v736
        %739 = vrot.lane.b32.xlu0 %v737, 32
        %v740 = vpop.permute.xlu0 %739
        %741 = vrot.lane.b32.xlu0 %v738, 32
        %v742 = vpop.permute.xlu0 %741
        %vm743 = vcmp.lt.s32.totalorder %v246, 32
        %v744 = vsel %vm743, %v740, %v742
        %v745 = vsel %vm743, %v742, %v740
        %vm746 = vcmp.ge.s32.totalorder %v246, 32
        %vm747 = vcmp.ge.s32.totalorder %v438, 32
        %vm748 = vcmp.lt.s32.totalorder %v246, 288
        %vm749 = vcmp.lt.s32.totalorder %v438, 288
        %vm750 = vmand %vm746, %vm748
        %vm751 = vmand %vm747, %vm749
        %v752 = vsel %vm750, 1, 0
        %v753 = vsel %vm751, 1, 0
        %vm754 = vcmp.eq.s32.totalorder %v752, 1
        %vm755 = vcmp.eq.s32.totalorder %v753, 1
        %v756 = vsel %vm754, %v745, 0.0
        %v757 = vsel %vm755, %v744, 0.0
        %v758 = vadd.f32 %v674, %v756
        %v759 = vadd.f32 %v675, %v757
        %s760 = sld [smem:[#allocation6 + $0xe]]
        %s761 = sld [smem:[#allocation6 + $0x3f]]
        %v762 = vstv %s760
        %v763 = vstv %s761
        %v764 = vsel %vm465, %v762, %v763
        %v765 = vmul.f32 %v764, %v483
        %v766 = vmul.f32 %v764, %v484
        %v767 = vadd.f32 %v765, 0.0
        %v768 = vadd.f32 %v766, 0.0
        %s769 = sld [smem:[#allocation6 + $0xf]]
        %s770 = sld [smem:[#allocation6 + $0x40]]
        %v771 = vstv %s769
        %v772 = vstv %s770
        %v773 = vsel %vm465, %v771, %v772
        %v774 = vmul.f32 %v773, %v502
        %v775 = vmul.f32 %v773, %v503
        %v776 = vadd.f32 %v767, %v774
        %v777 = vadd.f32 %v768, %v775
        %s778 = sld [smem:[#allocation6 + $0x10]]
        %s779 = sld [smem:[#allocation6 + $0x41]]
        %v780 = vstv %s778
        %v781 = vstv %s779
        %v782 = vsel %vm465, %v780, %v781
        %v783 = vmul.f32 %v782, %v521
        %v784 = vmul.f32 %v782, %v522
        %v785 = vadd.f32 %v776, %v783
        %v786 = vadd.f32 %v777, %v784
        %s787 = sld [smem:[#allocation6 + $0x11]]
        %s788 = sld [smem:[#allocation6 + $0x42]]
        %v789 = vstv %s787
        %v790 = vstv %s788
        %v791 = vsel %vm465, %v789, %v790
        %v792 = vmul.f32 %v791, %v533
        %v793 = vmul.f32 %v791, %v534
        %v794 = vadd.f32 %v785, %v792
        %v795 = vadd.f32 %v786, %v793
        %s796 = sld [smem:[#allocation6 + $0x12]]
        %s797 = sld [smem:[#allocation6 + $0x43]]
        %v798 = vstv %s796
        %v799 = vstv %s797
        %v800 = vsel %vm465, %v798, %v799
        %v801 = vmul.f32 %v800, %v552
        %v802 = vmul.f32 %v800, %v553
        %v803 = vadd.f32 %v794, %v801
        %v804 = vadd.f32 %v795, %v802
        %s805 = sld [smem:[#allocation6 + $0x13]]
        %s806 = sld [smem:[#allocation6 + $0x44]]
        %v807 = vstv %s805
        %v808 = vstv %s806
        %v809 = vsel %vm465, %v807, %v808
        %v810 = vmul.f32 %v809, %v571
        %v811 = vmul.f32 %v809, %v572
        %v812 = vadd.f32 %v803, %v810
        %v813 = vadd.f32 %v804, %v811
        %s814 = sld [smem:[#allocation6 + $0x14]]
        %s815 = sld [smem:[#allocation6 + $0x45]]
        %v816 = vstv %s814
        %v817 = vstv %s815
        %v818 = vsel %vm465, %v816, %v817
        %v819 = vmul.f32 %v818, %v590
        %v820 = vmul.f32 %v818, %v591
        %v821 = vadd.f32 %v812, %v819
        %v822 = vadd.f32 %v813, %v820
        %823 = vrot.lane.b32.xlu0 %v821, 16
        %v824 = vpop.permute.xlu0 %823
        %825 = vrot.lane.b32.xlu0 %v822, 16
        %v826 = vpop.permute.xlu0 %825
        %vm827 = vcmp.lt.s32.totalorder %v246, 16
        %v828 = vsel %vm827, %v824, %v826
        %v829 = vsel %vm827, %v826, %v824
        %vm830 = vcmp.ge.s32.totalorder %v246, 16
        %vm831 = vcmp.ge.s32.totalorder %v438, 16
        %vm832 = vcmp.lt.s32.totalorder %v246, 272
        %vm833 = vcmp.lt.s32.totalorder %v438, 272
        %vm834 = vmand %vm830, %vm832
        %vm835 = vmand %vm831, %vm833
        %v836 = vsel %vm834, 1, 0
        %v837 = vsel %vm835, 1, 0
        %vm838 = vcmp.eq.s32.totalorder %v836, 1
        %vm839 = vcmp.eq.s32.totalorder %v837, 1
        %v840 = vsel %vm838, %v829, 0.0
        %v841 = vsel %vm839, %v828, 0.0
        %v842 = vadd.f32 %v758, %v840
        %v843 = vadd.f32 %v759, %v841
        %s844 = sld [smem:[#allocation6 + $0x15]]
        %s845 = sld [smem:[#allocation6 + $0x46]]
        %v846 = vstv %s844
        %v847 = vstv %s845
        %v848 = vsel %vm465, %v846, %v847
        %v849 = vmul.f32 %v848, %v483
        %v850 = vmul.f32 %v848, %v484
        %v851 = vadd.f32 %v849, 0.0
        %v852 = vadd.f32 %v850, 0.0
        %s853 = sld [smem:[#allocation6 + $0x16]]
        %s854 = sld [smem:[#allocation6 + $0x47]]
        %v855 = vstv %s853
        %v856 = vstv %s854
        %v857 = vsel %vm465, %v855, %v856
        %v858 = vmul.f32 %v857, %v502
        %v859 = vmul.f32 %v857, %v503
        %v860 = vadd.f32 %v851, %v858
        %v861 = vadd.f32 %v852, %v859
        %s862 = sld [smem:[#allocation6 + $0x17]]
        %s863 = sld [smem:[#allocation6 + $0x48]]
        %v864 = vstv %s862
        %v865 = vstv %s863
        %v866 = vsel %vm465, %v864, %v865
        %v867 = vmul.f32 %v866, %v521
        %v868 = vmul.f32 %v866, %v522
        %v869 = vadd.f32 %v860, %v867
        %v870 = vadd.f32 %v861, %v868
        %s871 = sld [smem:[#allocation6 + $0x18]]
        %s872 = sld [smem:[#allocation6 + $0x49]]
        %v873 = vstv %s871
        %v874 = vstv %s872
        %v875 = vsel %vm465, %v873, %v874
        %v876 = vmul.f32 %v875, %v533
        %v877 = vmul.f32 %v875, %v534
        %v878 = vadd.f32 %v869, %v876
        %v879 = vadd.f32 %v870, %v877
        %s880 = sld [smem:[#allocation6 + $0x19]]
        %s881 = sld [smem:[#allocation6 + $0x4a]]
        %v882 = vstv %s880
        %v883 = vstv %s881
        %v884 = vsel %vm465, %v882, %v883
        %v885 = vmul.f32 %v884, %v552
        %v886 = vmul.f32 %v884, %v553
        %v887 = vadd.f32 %v878, %v885
        %v888 = vadd.f32 %v879, %v886
        %s889 = sld [smem:[#allocation6 + $0x1a]]
        %s890 = sld [smem:[#allocation6 + $0x4b]]
        %v891 = vstv %s889
        %v892 = vstv %s890
        %v893 = vsel %vm465, %v891, %v892
        %v894 = vmul.f32 %v893, %v571
        %v895 = vmul.f32 %v893, %v572
        %v896 = vadd.f32 %v887, %v894
        %v897 = vadd.f32 %v888, %v895
        %s898 = sld [smem:[#allocation6 + $0x1b]]
        %s899 = sld [smem:[#allocation6 + $0x4c]]
        %v900 = vstv %s898
        %v901 = vstv %s899
        %v902 = vsel %vm465, %v900, %v901
        %v903 = vmul.f32 %v902, %v590
        %v904 = vmul.f32 %v902, %v591
        %v905 = vadd.f32 %v896, %v903
        %v906 = vadd.f32 %v897, %v904
        %vm907 = vcmp.ge.s32.totalorder %v246, 0
        %vm908 = vcmp.ge.s32.totalorder %v438, 0
        %vm909 = vcmp.lt.s32.totalorder %v246, 256
        %vm910 = vcmp.lt.s32.totalorder %v438, 256
        %vm911 = vmand %vm907, %vm909
        %vm912 = vmand %vm908, %vm910
        %v913 = vsel %vm911, 1, 0
        %v914 = vsel %vm912, 1, 0
        %vm915 = vcmp.eq.s32.totalorder %v913, 1
        %vm916 = vcmp.eq.s32.totalorder %v914, 1
        %v917 = vsel %vm915, %v905, 0.0
        %v918 = vsel %vm916, %v906, 0.0
        %v919 = vadd.f32 %v842, %v917
        %v920 = vadd.f32 %v843, %v918
        %s921 = sld [smem:[#allocation6 + $0x1c]]
        %s922 = sld [smem:[#allocation6 + $0x4d]]
        %v923 = vstv %s921
        %v924 = vstv %s922
        %v925 = vsel %vm465, %v923, %v924
        %v926 = vmul.f32 %v925, %v483
        %v927 = vmul.f32 %v925, %v484
        %v928 = vadd.f32 %v926, 0.0
        %v929 = vadd.f32 %v927, 0.0
        %s930 = sld [smem:[#allocation6 + $0x1d]]
        %s931 = sld [smem:[#allocation6 + $0x4e]]
        %v932 = vstv %s930
        %v933 = vstv %s931
        %v934 = vsel %vm465, %v932, %v933
        %v935 = vmul.f32 %v934, %v502
        %v936 = vmul.f32 %v934, %v503
        %v937 = vadd.f32 %v928, %v935
        %v938 = vadd.f32 %v929, %v936
        %s939 = sld [smem:[#allocation6 + $0x1e]]
        %s940 = sld [smem:[#allocation6 + $0x4f]]
        %v941 = vstv %s939
        %v942 = vstv %s940
        %v943 = vsel %vm465, %v941, %v942
        %v944 = vmul.f32 %v943, %v521
        %v945 = vmul.f32 %v943, %v522
        %v946 = vadd.f32 %v937, %v944
        %v947 = vadd.f32 %v938, %v945
        %s948 = sld [smem:[#allocation6 + $0x1f]]
        %s949 = sld [smem:[#allocation6 + $0x50]]
        %v950 = vstv %s948
        %v951 = vstv %s949
        %v952 = vsel %vm465, %v950, %v951
        %v953 = vmul.f32 %v952, %v533
        %v954 = vmul.f32 %v952, %v534
        %v955 = vadd.f32 %v946, %v953
        %v956 = vadd.f32 %v947, %v954
        %s957 = sld [smem:[#allocation6 + $0x20]]
        %s958 = sld [smem:[#allocation6 + $0x51]]
        %v959 = vstv %s957
        %v960 = vstv %s958
        %v961 = vsel %vm465, %v959, %v960
        %v962 = vmul.f32 %v961, %v552
        %v963 = vmul.f32 %v961, %v553
        %v964 = vadd.f32 %v955, %v962
        %v965 = vadd.f32 %v956, %v963
        %s966 = sld [smem:[#allocation6 + $0x21]]
        %s967 = sld [smem:[#allocation6 + $0x52]]
        %v968 = vstv %s966
        %v969 = vstv %s967
        %v970 = vsel %vm465, %v968, %v969
        %v971 = vmul.f32 %v970, %v571
        %v972 = vmul.f32 %v970, %v572
        %v973 = vadd.f32 %v964, %v971
        %v974 = vadd.f32 %v965, %v972
        %s975 = sld [smem:[#allocation6 + $0x22]]
        %s976 = sld [smem:[#allocation6 + $0x53]]
        %v977 = vstv %s975
        %v978 = vstv %s976
        %v979 = vsel %vm465, %v977, %v978
        %v980 = vmul.f32 %v979, %v590
        %v981 = vmul.f32 %v979, %v591
        %v982 = vadd.f32 %v973, %v980
        %v983 = vadd.f32 %v974, %v981
        %984 = vrot.lane.b32.xlu0 %v982, 112
        %v985 = vpop.permute.xlu0 %984
        %986 = vrot.lane.b32.xlu0 %v983, 112
        %v987 = vpop.permute.xlu0 %986
        %vm988 = vcmp.lt.s32.totalorder %v246, 112
        %v989 = vsel %vm988, %v985, %v987
        %v990 = vsel %vm988, %v987, %v985
        %vm991 = vcmp.ge.s32.totalorder %v246, 4294967280
        %vm992 = vcmp.ge.s32.totalorder %v438, 4294967280
        %vm993 = vcmp.lt.s32.totalorder %v246, 240
        %vm994 = vcmp.lt.s32.totalorder %v438, 240
        %vm995 = vmand %vm991, %vm993
        %vm996 = vmand %vm992, %vm994
        %v997 = vsel %vm995, 1, 0
        %v998 = vsel %vm996, 1, 0
        %vm999 = vcmp.eq.s32.totalorder %v997, 1
        %vm1000 = vcmp.eq.s32.totalorder %v998, 1
        %v1001 = vsel %vm999, %v989, 0.0
        %v1002 = vsel %vm1000, %v990, 0.0
        %v1003 = vadd.f32 %v919, %v1001
        %v1004 = vadd.f32 %v920, %v1002
        %s1005 = sld [smem:[#allocation6 + $0x23]]
        %s1006 = sld [smem:[#allocation6 + $0x54]]
        %v1007 = vstv %s1005
        %v1008 = vstv %s1006
        %v1009 = vsel %vm465, %v1007, %v1008
        %v1010 = vmul.f32 %v1009, %v483
        %v1011 = vmul.f32 %v1009, %v484
        %v1012 = vadd.f32 %v1010, 0.0
        %v1013 = vadd.f32 %v1011, 0.0
        %s1014 = sld [smem:[#allocation6 + $0x24]]
        %s1015 = sld [smem:[#allocation6 + $0x55]]
        %v1016 = vstv %s1014
        %v1017 = vstv %s1015
        %v1018 = vsel %vm465, %v1016, %v1017
        %v1019 = vmul.f32 %v1018, %v502
        %v1020 = vmul.f32 %v1018, %v503
        %v1021 = vadd.f32 %v1012, %v1019
        %v1022 = vadd.f32 %v1013, %v1020
        %s1023 = sld [smem:[#allocation6 + $0x25]]
        %s1024 = sld [smem:[#allocation6 + $0x56]]
        %v1025 = vstv %s1023
        %v1026 = vstv %s1024
        %v1027 = vsel %vm465, %v1025, %v1026
        %v1028 = vmul.f32 %v1027, %v521
        %v1029 = vmul.f32 %v1027, %v522
        %v1030 = vadd.f32 %v1021, %v1028
        %v1031 = vadd.f32 %v1022, %v1029
        %s1032 = sld [smem:[#allocation6 + $0x26]]
        %s1033 = sld [smem:[#allocation6 + $0x57]]
        %v1034 = vstv %s1032
        %v1035 = vstv %s1033
        %v1036 = vsel %vm465, %v1034, %v1035
        %v1037 = vmul.f32 %v1036, %v533
        %v1038 = vmul.f32 %v1036, %v534
        %v1039 = vadd.f32 %v1030, %v1037
        %v1040 = vadd.f32 %v1031, %v1038
        %s1041 = sld [smem:[#allocation6 + $0x27]]
        %s1042 = sld [smem:[#allocation6 + $0x58]]
        %v1043 = vstv %s1041
        %v1044 = vstv %s1042
        %v1045 = vsel %vm465, %v1043, %v1044
        %v1046 = vmul.f32 %v1045, %v552
        %v1047 = vmul.f32 %v1045, %v553
        %v1048 = vadd.f32 %v1039, %v1046
        %v1049 = vadd.f32 %v1040, %v1047
        %s1050 = sld [smem:[#allocation6 + $0x28]]
        %s1051 = sld [smem:[#allocation6 + $0x59]]
        %v1052 = vstv %s1050
        %v1053 = vstv %s1051
        %v1054 = vsel %vm465, %v1052, %v1053
        %v1055 = vmul.f32 %v1054, %v571
        %v1056 = vmul.f32 %v1054, %v572
        %v1057 = vadd.f32 %v1048, %v1055
        %v1058 = vadd.f32 %v1049, %v1056
        %s1059 = sld [smem:[#allocation6 + $0x29]]
        %s1060 = sld [smem:[#allocation6 + $0x5a]]
        %v1061 = vstv %s1059
        %v1062 = vstv %s1060
        %v1063 = vsel %vm465, %v1061, %v1062
        %v1064 = vmul.f32 %v1063, %v590
        %v1065 = vmul.f32 %v1063, %v591
        %v1066 = vadd.f32 %v1057, %v1064
        %v1067 = vadd.f32 %v1058, %v1065
        %1068 = vrot.lane.b32.xlu0 %v1066, 96
        %v1069 = vpop.permute.xlu0 %1068
        %1070 = vrot.lane.b32.xlu0 %v1067, 96
        %v1071 = vpop.permute.xlu0 %1070
        %vm1072 = vcmp.lt.s32.totalorder %v246, 96
        %v1073 = vsel %vm1072, %v1069, %v1071
        %v1074 = vsel %vm1072, %v1071, %v1069
        %vm1075 = vcmp.ge.s32.totalorder %v246, 4294967264
        %vm1076 = vcmp.ge.s32.totalorder %v438, 4294967264
        %vm1077 = vcmp.lt.s32.totalorder %v246, 224
        %vm1078 = vcmp.lt.s32.totalorder %v438, 224
        %vm1079 = vmand %vm1075, %vm1077
        %vm1080 = vmand %vm1076, %vm1078
        %v1081 = vsel %vm1079, 1, 0
        %v1082 = vsel %vm1080, 1, 0
        %vm1083 = vcmp.eq.s32.totalorder %v1081, 1
        %vm1084 = vcmp.eq.s32.totalorder %v1082, 1
        %v1085 = vsel %vm1083, %v1073, 0.0
        %v1086 = vsel %vm1084, %v1074, 0.0
        %v1087 = vadd.f32 %v1003, %v1085
        %v1088 = vadd.f32 %v1004, %v1086
        %s1089 = sld [smem:[#allocation6 + $0x2a]]
        %s1090 = sld [smem:[#allocation6 + $0x5b]]
        %v1091 = vstv %s1089
        %v1092 = vstv %s1090
        %v1093 = vsel %vm465, %v1091, %v1092
        %v1094 = vmul.f32 %v1093, %v483
        %v1095 = vmul.f32 %v1093, %v484
        %v1096 = vadd.f32 %v1094, 0.0
        %v1097 = vadd.f32 %v1095, 0.0
        %s1098 = sld [smem:[#allocation6 + $0x2b]]
        %s1099 = sld [smem:[#allocation6 + $0x5c]]
        %v1100 = vstv %s1098
        %v1101 = vstv %s1099
        %v1102 = vsel %vm465, %v1100, %v1101
        %v1103 = vmul.f32 %v1102, %v502
        %v1104 = vmul.f32 %v1102, %v503
        %v1105 = vadd.f32 %v1096, %v1103
        %v1106 = vadd.f32 %v1097, %v1104
        %s1107 = sld [smem:[#allocation6 + $0x2c]]
        %s1108 = sld [smem:[#allocation6 + $0x5d]]
        %v1109 = vstv %s1107
        %v1110 = vstv %s1108
        %v1111 = vsel %vm465, %v1109, %v1110
        %v1112 = vmul.f32 %v1111, %v521
        %v1113 = vmul.f32 %v1111, %v522
        %v1114 = vadd.f32 %v1105, %v1112
        %v1115 = vadd.f32 %v1106, %v1113
        %s1116 = sld [smem:[#allocation6 + $0x2d]]
        %s1117 = sld [smem:[#allocation6 + $0x5e]]
        %v1118 = vstv %s1116
        %v1119 = vstv %s1117
        %v1120 = vsel %vm465, %v1118, %v1119
        %v1121 = vmul.f32 %v1120, %v533
        %v1122 = vmul.f32 %v1120, %v534
        %v1123 = vadd.f32 %v1114, %v1121
        %v1124 = vadd.f32 %v1115, %v1122
        %s1125 = sld [smem:[#allocation6 + $0x2e]]
        %s1126 = sld [smem:[#allocation6 + $0x5f]]
        %v1127 = vstv %s1125
        %v1128 = vstv %s1126
        %v1129 = vsel %vm465, %v1127, %v1128
        %v1130 = vmul.f32 %v1129, %v552
        %v1131 = vmul.f32 %v1129, %v553
        %v1132 = vadd.f32 %v1123, %v1130
        %v1133 = vadd.f32 %v1124, %v1131
        %s1134 = sld [smem:[#allocation6 + $0x2f]]
        %s1135 = sld [smem:[#allocation6 + $0x60]]
        %v1136 = vstv %s1134
        %v1137 = vstv %s1135
        %v1138 = vsel %vm465, %v1136, %v1137
        %v1139 = vmul.f32 %v1138, %v571
        %v1140 = vmul.f32 %v1138, %v572
        %v1141 = vadd.f32 %v1132, %v1139
        %v1142 = vadd.f32 %v1133, %v1140
        %s1143 = sld [smem:[#allocation6 + $0x30]]
        %s1144 = sld [smem:[#allocation6 + $0x61]]
        %v1145 = vstv %s1143
        %v1146 = vstv %s1144
        %v1147 = vsel %vm465, %v1145, %v1146
        %v1148 = vmul.f32 %v1147, %v590
        %v1149 = vmul.f32 %v1147, %v591
        %v1150 = vadd.f32 %v1141, %v1148
        %v1151 = vadd.f32 %v1142, %v1149
        %1152 = vrot.lane.b32.xlu0 %v1150, 80
        %v1153 = vpop.permute.xlu0 %1152
        %1154 = vrot.lane.b32.xlu0 %v1151, 80
        %v1155 = vpop.permute.xlu0 %1154
        %vm1156 = vcmp.lt.s32.totalorder %v246, 80
        %v1157 = vsel %vm1156, %v1153, %v1155
        %v1158 = vsel %vm1156, %v1155, %v1153
        %vm1159 = vcmp.ge.s32.totalorder %v246, 4294967248
        %vm1160 = vcmp.ge.s32.totalorder %v438, 4294967248
        %vm1161 = vcmp.lt.s32.totalorder %v246, 208
        %vm1162 = vcmp.lt.s32.totalorder %v438, 208
        %vm1163 = vmand %vm1159, %vm1161
        %vm1164 = vmand %vm1160, %vm1162
        %v1165 = vsel %vm1163, 1, 0
        %v1166 = vsel %vm1164, 1, 0
        %vm1167 = vcmp.eq.s32.totalorder %v1165, 1
        %vm1168 = vcmp.eq.s32.totalorder %v1166, 1
        %v1169 = vsel %vm1167, %v1157, 0.0
        %v1170 = vsel %vm1168, %v1158, 0.0
        %v1171 = vadd.f32 %v1087, %v1169
        %v1172 = vadd.f32 %v1088, %v1170
        %v1175 = vrot.slane %v1171, 1
        %v1176 = vrot.slane %v1172, 1
        %v1179 = vadd.f32 %v1171, %v1175
        %v1180 = vadd.f32 %v1172, %v1176
        %v1181 = vxor.u32 %v1179, 2147483648
        %v1182 = vxor.u32 %v1180, 2147483648
        %v1183 = vmul.f32 %v1181, 1.442695
        %v1184 = vpow.pop %v1183
        %v1185 = vmul.f32 %v1182, 1.442695
        %v1186 = vpow.pop %v1185
        %v1187 = vadd.f32 %v1184, 1.0
        %v1188 = vadd.f32 %v1186, 1.0
        %v1189 = vrcp.pop %v1187
        %v1190 = vmul.f32 1.0, %v1189
        %v1191 = vrcp.pop %v1188
        %v1192 = vmul.f32 1.0, %v1191
        %v1193 = vlaneseq
        %v1194 = vshrl.u32 %v1193, 7
        %v1195 = vsub.s32 0, %v1194
        %v1196 = vrot.slane %v1190, %v1195
        %v1197 = vlaneseq
        %v1198 = vshrl.u32 %v1197, 7
        %v1199 = vsub.s32 0, %v1198
        %v1200 = vrot.slane %v1192, %v1199
        %v1203 = vcombine.low %v1196, %v1200
        %v1205 = vmul.f32 %v402, %v1203
        %1206 = vst [vmem:[%s227] sm:$0xff] %v1205
        %s1207 = sand.u32 %s119, 1
        %s1208 = scalar_lea.sflag [#allocation4], %s1207
        %s1209 = sand.u32 %s119, 1
        %s1210 = smul.addr %s1209, 8
        %s1211 = scalar_lea.vmem [#allocation7], %s1210
        // Predicated region
        $region45: #{tpu_custom_call.1} parent=35 // pred_check
          %p1212 = pneg %p129
        $region46: #{tpu_custom_call.1} parent=35 // pred_check_branch
          %1214 = sbr.rel (%p1212) target = $region48
        $region47: #{tpu_custom_call.1} parent=35 // pred_region
          %s1216 = ssub.s32 128, 128
          %1217 = vsyncadd %s1208, %s1216
          %s1218 = smul.addr %s22, 2
          %s1219 = smul.addr %s1218, 64
          %s1220 = scalar_lea.hbm %s4, %s1219
          %s1222 = sshll.u32 %s1211, 4
          %s1223 = int_to_ptr.vmem [resolvable:$true] %s1222
          %1225 = dma.vmem_to_hbm [thread:$0]  %s1223, 128, %s1220, %s1208
        $region48: #{tpu_custom_call.1} parent=35 // pred_fallthru
          _
      $region36: #{tpu_custom_call.1} parent=5 // pred_fallthru
        _
      %p1226 = scmp.le.s32.totalorder 2, %s17
      // Predicated region
      $region49: #{tpu_custom_call.1} parent=5 // pred_check
        %p1227 = pneg %p1226
      $region50: #{tpu_custom_call.1} parent=5 // pred_check_branch
        %1229 = sbr.rel (%p1227) target = $region52
      $region51: #{tpu_custom_call.1} parent=5 // pred_region
        %s1230 = ssub.s32 %s17, 2
        // Predicated region
        $region53: #{tpu_custom_call.1} parent=51 // pred_check
          %p1231 = pneg %p135
        $region54: #{tpu_custom_call.1} parent=51 // pred_check_branch
          %1233 = sbr.rel (%p1231) target = $region56
        $region55: #{tpu_custom_call.1} parent=51 // pred_region
          %s1234 = sand.u32 %s120, 1
          %s1235 = scalar_lea.sflag [#allocation4], %s1234
          %s1236 = sand.u32 %s120, 1
          %s1237 = smul.addr %s1236, 8
          %s1238 = scalar_lea.vmem [#allocation7], %s1237
          %1239 = dma.done %s1235, 128
        $region56: #{tpu_custom_call.1} parent=51 // pred_fallthru
          _
      $region52: #{tpu_custom_call.1} parent=5 // pred_fallthru
        _
    $region6: #{tpu_custom_call.1} parent=1 // loop_footer
      %s21 = sadd.s32 1, %s17
    $region7: #{tpu_custom_call.1} parent=1 // loop_footer_branch
      %16 = sbr.rel target = $region3
    $region8: #{tpu_custom_call.1} parent=1 // loop_exit
      _
    %1240 = vsyncpa [#allocation3], 1
    %s1241 = scalar_lea.sflag [#allocation3], 1
    %1242 = vsyncpa %s1241, 1
    %1243 = vsyncpa [#allocation4], 1
    %s1244 = scalar_lea.sflag [#allocation4], 1
    %1245 = vsyncpa %s1244, 1
    %1246 = vsyncpa [#allocation5], 1
    %s1247 = scalar_lea.sflag [#allocation5], 1
    %1248 = vsyncpa %s1247, 1

</llo_original>
